<compile_context>
chip_gen: v6e
topology: v6e:2x2x1
jax: 0.10.0
libtpu: 0.0.40
codegen_flags: <defaults>
</compile_context>

<pallas_src>
import functools

import jax
import jax.numpy as jnp
from jax.experimental import pallas as pl
from jax.experimental.pallas import tpu as pltpu

FEAT = 12            # the module is Linear(12, 12) x 3
GROUP = 32           # samples packed per row: 12 * 32 = 384 = 3 * 128 lanes
ROW = FEAT * GROUP   # 384


def _round_up(n, m):
    return ((n + m - 1) // m) * m


def _cdiv(a, b):
    return -(-a // b)


def _ffn_kernel(x_ref, w1_ref, b1_ref, w2_ref, b2_ref, w3_ref, b3_ref, o_ref):
    # x_ref : [R, 384] f32  (32 samples x 12 features packed per lane-dense row)
    # w*_ref: [384, 384] bf16 block-diagonal kron(I_32, W^T)  -> the weight is the
    #         small staged MXU operand; packed batch rows stream as M.
    # b*_ref: [1, 384] f32 (bias tiled 32x; broadcasts over rows)
    # o_ref : [R, 384] out dtype
    x = x_ref[...].astype(jnp.bfloat16)

    # layer 1: Linear + ReLU (+ dropout = identity in eval mode)
    h = jnp.dot(x, w1_ref[...], preferred_element_type=jnp.float32) + b1_ref[...]
    h = jnp.maximum(h, 0.0)

    # layer 2: Linear + ReLU (+ dropout = identity in eval mode)
    h = jnp.dot(h.astype(jnp.bfloat16), w2_ref[...],
                preferred_element_type=jnp.float32) + b2_ref[...]
    h = jnp.maximum(h, 0.0)

    # layer 3: Linear
    o = jnp.dot(h.astype(jnp.bfloat16), w3_ref[...],
                preferred_element_type=jnp.float32) + b3_ref[...]
    o_ref[...] = o.astype(o_ref.dtype)


def _pack_weight(w):
    # PyTorch Linear weight [out, in] -> block-diagonal [ROW, ROW] bf16 so that
    # packed_row @ Wbig applies x @ W^T independently to each of the 32 samples.
    return jnp.kron(jnp.eye(GROUP, dtype=jnp.float32), w.T).astype(jnp.bfloat16)


def _pack_bias(b):
    # PyTorch Linear bias [out] -> [1, ROW] f32 row (broadcasts over packed rows).
    return jnp.tile(b.reshape(-1), GROUP).reshape(1, ROW).astype(jnp.float32)


@functools.partial(jax.jit, static_argnames=("batch_tile", "out_dtype"))
def ffn_forward(x, params, *, batch_tile=32768, out_dtype=jnp.float32):
    """x: [B, 12] f32.  params: PyTorch-shaped w1/w2/w3 [12,12] ([out,in]) and
    b1/b2/b3 [12].  Returns [B, 12] in `out_dtype` (f32 default)."""
    B, F = x.shape
    assert F == FEAT
    # Lane/sublane constraint: packed rows per tile must be a multiple of 8
    # sublanes; the 384-wide packed row is already 3*128 lanes (never masked).
    assert batch_tile % (8 * GROUP) == 0, "batch_tile must be a multiple of 256"

    # Pack samples: [B, 12] -> [B/32, 384].  The reshape is a free row-major
    # re-view; the pad (one extra HBM pass) only triggers when B % 32 != 0.
    Bp = _round_up(B, GROUP)
    if Bp != B:
        x = jnp.pad(x, ((0, Bp - B), (0, 0)))
    rows = Bp // GROUP
    xp = x.reshape(rows, ROW)

    # Tile sizing: as big as the VMEM budget allows, but keep >= 2 grid steps
    # when the batch is large enough so v7x's two TensorCores both get work.
    if rows <= 8:
        r_tile = rows                                   # full (tiny-batch) block
    else:
        r_tile = min(batch_tile // GROUP,               # requested tile (samples/32)
                     max(8, _round_up(_cdiv(rows, 2), 8)))  # >= 2 tiles for 2 TCs
    num_tiles = _cdiv(rows, r_tile)                     # ragged last block is masked

    w1 = _pack_weight(params["w1"]); b1 = _pack_bias(params["b1"])
    w2 = _pack_weight(params["w2"]); b2 = _pack_bias(params["b2"])
    w3 = _pack_weight(params["w3"]); b3 = _pack_bias(params["b3"])

    x_spec = pl.BlockSpec((r_tile, ROW), lambda i: (i, 0))
    w_spec = pl.BlockSpec((ROW, ROW), lambda i: (0, 0))     # fetched once, VMEM-resident
    b_spec = pl.BlockSpec((1, ROW), lambda i: (0, 0))       # fetched once, VMEM-resident
    o_spec = pl.BlockSpec((r_tile, ROW), lambda i: (i, 0))
    # NOTE(v6e): if profiling ever shows the output writeback DMA exposed, add
    # pipeline_mode=pl.Buffered(3) to o_spec instead of shrinking the tile.

    out_itemsize = jnp.dtype(out_dtype).itemsize
    flops = 3 * 2 * (num_tiles * r_tile) * ROW * ROW
    bytes_accessed = (rows * ROW * 4                 # x (f32)
                      + rows * ROW * out_itemsize    # output
                      + 3 * ROW * ROW * 2            # block-diag weights (bf16)
                      + 3 * ROW * 4)                 # biases (f32)

    out_p = pl.pallas_call(
        _ffn_kernel,
        out_shape=jax.ShapeDtypeStruct((rows, ROW), out_dtype),
        grid=(num_tiles,),
        in_specs=[x_spec, w_spec, b_spec, w_spec, b_spec, w_spec, b_spec],
        out_specs=o_spec,
        compiler_params=pltpu.CompilerParams(
            # independent batch tiles -> shard grid steps across v7x's two TCs
            dimension_semantics=("parallel",),
            # raise v5e's 16 MiB default scoped-VMEM so the big tile survives;
            # 32 MiB is within every generation's physical VMEM (v7x: 64 MiB).
            vmem_limit_bytes=32 * 1024 * 1024,
        ),
        cost_estimate=pl.CostEstimate(
            flops=flops, transcendentals=0, bytes_accessed=bytes_accessed),
    )(xp, w1, b1, w2, b2, w3, b3)

    out = out_p.reshape(Bp, FEAT)                    # free reshape back to row-major
    return out[:B] if Bp != B else out


def init_params(key):
    """PyTorch Linear default init U(-1/sqrt(fan_in), 1/sqrt(fan_in)), PyTorch shapes."""
    bound = 1.0 / jnp.sqrt(jnp.float32(FEAT))
    keys = jax.random.split(key, 6)
    u = lambda k, shape: jax.random.uniform(
        k, shape, dtype=jnp.float32, minval=-bound, maxval=bound)
    return {
        "w1": u(keys[0], (FEAT, FEAT)), "b1": u(keys[1], (FEAT,)),   # [out, in], [out]
        "w2": u(keys[2], (FEAT, FEAT)), "b2": u(keys[3], (FEAT,)),
        "w3": u(keys[4], (FEAT, FEAT)), "b3": u(keys[5], (FEAT,)),
    }


def ffn_reference(x, params):
    """Pure-JAX reference with matching bf16-matmul / f32-accumulate math."""
    def lin(h, w, b):
        return jnp.dot(h.astype(jnp.bfloat16), w.astype(jnp.bfloat16).T,
                       preferred_element_type=jnp.float32) + b.reshape(1, -1)
    h = jnp.maximum(lin(x, params["w1"], params["b1"]), 0.0)
    h = jnp.maximum(lin(h, params["w2"], params["b2"]), 0.0)
    return lin(h, params["w3"], params["b3"])


if __name__ == "__main__":
    key = jax.random.PRNGKey(0)
    pkey, xkey = jax.random.split(key)
    params = init_params(pkey)

    # small shape consistent with the module: batch=8, features=12
    x = jax.random.normal(xkey, (8, FEAT), dtype=jnp.float32)
    out = jax.block_until_ready(ffn_forward(x, params))
    ref = ffn_reference(x, params)
    assert out.shape == (8, FEAT)
    assert jnp.allclose(out, ref, atol=1e-4, rtol=1e-4), "mismatch vs reference (B=8)"

    # multi-tile grid + ragged (non-multiple-of-32) batch path
    x_big = jax.random.normal(xkey, (1000, FEAT), dtype=jnp.float32)
    out_big = jax.block_until_ready(ffn_forward(x_big, params))
    ref_big = ffn_reference(x_big, params)
    assert out_big.shape == (1000, FEAT)
    assert jnp.allclose(out_big, ref_big, atol=1e-4, rtol=1e-4), "mismatch vs reference (B=1000)"

    print("KERNEL_OK")
</pallas_src>

<mosaic_0001>
module attributes {stable_mosaic.version = 11 : i64} {
  func.func @_ffn_kernel(%arg0: i32, %arg1: memref<1x384xf32, #tpu.memory_space<vmem>>, %arg2: memref<384x384xbf16, #tpu.memory_space<vmem>>, %arg3: memref<1x384xf32, #tpu.memory_space<vmem>>, %arg4: memref<384x384xbf16, #tpu.memory_space<vmem>>, %arg5: memref<1x384xf32, #tpu.memory_space<vmem>>, %arg6: memref<384x384xbf16, #tpu.memory_space<vmem>>, %arg7: memref<1x384xf32, #tpu.memory_space<vmem>>, %arg8: memref<1x384xf32, #tpu.memory_space<vmem>>) attributes {dimension_semantics = [#tpu.dimension_semantics<parallel>], iteration_bounds = array<i64: 1>, scalar_prefetch = 0 : i64, scratch_operands = 0 : i64, tpu.core_type = #tpu.core_type<tc>, window_params = [{transform_indices = @transform_0, window_bounds = array<i64: 1, 384>}, {pipeline_mode = #tpu.pipeline_mode<synchronous>, transform_indices = @transform_1, window_bounds = array<i64: 384, 384>}, {pipeline_mode = #tpu.pipeline_mode<synchronous>, transform_indices = @transform_2, window_bounds = array<i64: 1, 384>}, {pipeline_mode = #tpu.pipeline_mode<synchronous>, transform_indices = @transform_3, window_bounds = array<i64: 384, 384>}, {pipeline_mode = #tpu.pipeline_mode<synchronous>, transform_indices = @transform_4, window_bounds = array<i64: 1, 384>}, {pipeline_mode = #tpu.pipeline_mode<synchronous>, transform_indices = @transform_5, window_bounds = array<i64: 384, 384>}, {pipeline_mode = #tpu.pipeline_mode<synchronous>, transform_indices = @transform_6, window_bounds = array<i64: 1, 384>}, {transform_indices = @transform_7, window_bounds = array<i64: 1, 384>}]} {
    %c0 = arith.constant 0 : index
    %c0_0 = arith.constant 0 : index
    %0 = vector.load %arg1[%c0, %c0_0] : memref<1x384xf32, #tpu.memory_space<vmem>>, vector<1x384xf32>
    %1 = arith.truncf %0 : vector<1x384xf32> to vector<1x384xbf16>
    %c0_1 = arith.constant 0 : index
    %c0_2 = arith.constant 0 : index
    %2 = vector.load %arg2[%c0_1, %c0_2] : memref<384x384xbf16, #tpu.memory_space<vmem>>, vector<384x384xbf16>
    %cst = arith.constant dense<0.000000e+00> : vector<1x384xf32>
    %3 = tpu.matmul %1, %2, %cst {dimension_numbers = #tpu.dot_dimension_numbers<[1], [0], [0], [1], [0, 0, 1, 1], [], []>} : vector<1x384xbf16>, vector<384x384xbf16>, vector<1x384xf32> -> vector<1x384xf32>
    %c0_3 = arith.constant 0 : index
    %c0_4 = arith.constant 0 : index
    %4 = vector.load %arg3[%c0_3, %c0_4] : memref<1x384xf32, #tpu.memory_space<vmem>>, vector<1x384xf32>
    %5 = arith.addf %3, %4 : vector<1x384xf32>
    %cst_5 = arith.constant 0.000000e+00 : f32
    %6 = vector.broadcast %cst_5 : f32 to vector<1x384xf32>
    %7 = arith.maximumf %5, %6 : vector<1x384xf32>
    %8 = arith.truncf %7 : vector<1x384xf32> to vector<1x384xbf16>
    %c0_6 = arith.constant 0 : index
    %c0_7 = arith.constant 0 : index
    %9 = vector.load %arg4[%c0_6, %c0_7] : memref<384x384xbf16, #tpu.memory_space<vmem>>, vector<384x384xbf16>
    %cst_8 = arith.constant dense<0.000000e+00> : vector<1x384xf32>
    %10 = tpu.matmul %8, %9, %cst_8 {dimension_numbers = #tpu.dot_dimension_numbers<[1], [0], [0], [1], [0, 0, 1, 1], [], []>} : vector<1x384xbf16>, vector<384x384xbf16>, vector<1x384xf32> -> vector<1x384xf32>
    %c0_9 = arith.constant 0 : index
    %c0_10 = arith.constant 0 : index
    %11 = vector.load %arg5[%c0_9, %c0_10] : memref<1x384xf32, #tpu.memory_space<vmem>>, vector<1x384xf32>
    %12 = arith.addf %10, %11 : vector<1x384xf32>
    %cst_11 = arith.constant 0.000000e+00 : f32
    %13 = vector.broadcast %cst_11 : f32 to vector<1x384xf32>
    %14 = arith.maximumf %12, %13 : vector<1x384xf32>
    %15 = arith.truncf %14 : vector<1x384xf32> to vector<1x384xbf16>
    %c0_12 = arith.constant 0 : index
    %c0_13 = arith.constant 0 : index
    %16 = vector.load %arg6[%c0_12, %c0_13] : memref<384x384xbf16, #tpu.memory_space<vmem>>, vector<384x384xbf16>
    %cst_14 = arith.constant dense<0.000000e+00> : vector<1x384xf32>
    %17 = tpu.matmul %15, %16, %cst_14 {dimension_numbers = #tpu.dot_dimension_numbers<[1], [0], [0], [1], [0, 0, 1, 1], [], []>} : vector<1x384xbf16>, vector<384x384xbf16>, vector<1x384xf32> -> vector<1x384xf32>
    %c0_15 = arith.constant 0 : index
    %c0_16 = arith.constant 0 : index
    %18 = vector.load %arg7[%c0_15, %c0_16] : memref<1x384xf32, #tpu.memory_space<vmem>>, vector<1x384xf32>
    %19 = arith.addf %17, %18 : vector<1x384xf32>
    %c0_17 = arith.constant 0 : index
    %c0_18 = arith.constant 0 : index
    %20 = vector.load %arg8[%c0_17, %c0_18] : memref<1x384xf32, #tpu.memory_space<vmem>>, vector<1x384xf32>
    tpu.vector_store %arg8[%c0_17, %c0_18], %19 {strides = array<i32>} : memref<1x384xf32, #tpu.memory_space<vmem>>, vector<1x384xf32>,
    return
  }
  func.func @transform_0(%arg0: i32) -> (i32, i32) {
    %c0_i32 = arith.constant 0 : i32
    %c0_i32_0 = arith.constant 0 : i32
    return %arg0, %c0_i32 : i32, i32
  }
  func.func @transform_1(%arg0: i32) -> (i32, i32) {
    %c0_i32 = arith.constant 0 : i32
    %c0_i32_0 = arith.constant 0 : i32
    %c0_i32_1 = arith.constant 0 : i32
    return %c0_i32, %c0_i32_0 : i32, i32
  }
  func.func @transform_2(%arg0: i32) -> (i32, i32) {
    %c0_i32 = arith.constant 0 : i32
    %c0_i32_0 = arith.constant 0 : i32
    %c0_i32_1 = arith.constant 0 : i32
    return %c0_i32, %c0_i32_0 : i32, i32
  }
  func.func @transform_3(%arg0: i32) -> (i32, i32) {
    %c0_i32 = arith.constant 0 : i32
    %c0_i32_0 = arith.constant 0 : i32
    %c0_i32_1 = arith.constant 0 : i32
    return %c0_i32, %c0_i32_0 : i32, i32
  }
  func.func @transform_4(%arg0: i32) -> (i32, i32) {
    %c0_i32 = arith.constant 0 : i32
    %c0_i32_0 = arith.constant 0 : i32
    %c0_i32_1 = arith.constant 0 : i32
    return %c0_i32, %c0_i32_0 : i32, i32
  }
  func.func @transform_5(%arg0: i32) -> (i32, i32) {
    %c0_i32 = arith.constant 0 : i32
    %c0_i32_0 = arith.constant 0 : i32
    %c0_i32_1 = arith.constant 0 : i32
    return %c0_i32, %c0_i32_0 : i32, i32
  }
  func.func @transform_6(%arg0: i32) -> (i32, i32) {
    %c0_i32 = arith.constant 0 : i32
    %c0_i32_0 = arith.constant 0 : i32
    %c0_i32_1 = arith.constant 0 : i32
    return %c0_i32, %c0_i32_0 : i32, i32
  }
  func.func @transform_7(%arg0: i32) -> (i32, i32) {
    %c0_i32 = arith.constant 0 : i32
    %c0_i32_0 = arith.constant 0 : i32
    return %arg0, %c0_i32 : i32, i32
  }
}

</mosaic_0001>

<llo_original>
// kernel: tile.18
$region0: #{tile.18}
  #allocation0 [shape = 's32[1]{0}', space=sflag, size = 0x4, scoped, tag = 'scoped memory for tile.18']
  %s0 = inlined_call_operand.vmem [shape: f32[12], index: 0, kind: input, shape index: {}]
  %s1 = inlined_call_operand.vmem [shape: f32[32,12], index: 1, kind: output, shape index: {}]
  // Predicated region
  $region2: #{tile.18} parent=0 // pred_check
    _
  $region3: #{tile.18} parent=0 // pred_check_branch
    %3 = sbr.rel (0) target = $region5
  $region4: #{tile.18} parent=0 // pred_region
    _
  $region5: #{tile.18} parent=0 // pred_fallthru
    _
  %v4 = vld [vmem:[%s0] ss:$0 sm:$0xff]
  %5 = vst [vmem:[%s1] sm:$0xff] %v4
  %s6 = scalar_lea.vmem %s1, 8
  %7 = vst [vmem:[%s6] sm:$0xff] %v4
  %s8 = scalar_lea.vmem %s1, 16
  %9 = vst [vmem:[%s8] sm:$0xff] %v4
  %s10 = scalar_lea.vmem %s1, 24
  %11 = vst [vmem:[%s10] sm:$0xff] %v4

// kernel: ffn_forward.1
$region0: #{ffn_forward.1}
  #allocation0 [shape = 'u32[]', space=smem, size = 0x4, offset = 0x4, fixed_abs, tag = 'smem constant byte address 0x4 - core index']
  #allocation1 [shape = 'u32[144,128]{1,0:T(1,128)}', space=vmem, size = 0x12000, scoped, tag = 'internal scratch']
  %s0 = inlined_call_operand.vmem [shape: f32[1,384], index: 0, kind: input, shape index: {}]
  %s1 = inlined_call_operand.vmem [shape: bf16[384,384], index: 1, kind: input, shape index: {}]
  %s2 = inlined_call_operand.vmem [shape: f32[1,384], index: 2, kind: input, shape index: {}]
  %s3 = inlined_call_operand.vmem [shape: bf16[384,384], index: 3, kind: input, shape index: {}]
  %s4 = inlined_call_operand.vmem [shape: f32[1,384], index: 4, kind: input, shape index: {}]
  %s5 = inlined_call_operand.vmem [shape: bf16[384,384], index: 5, kind: input, shape index: {}]
  %s6 = inlined_call_operand.vmem [shape: f32[1,384], index: 6, kind: input, shape index: {}]
  %s7 = inlined_call_operand.vmem [shape: f32[1,384], index: 7, kind: output, shape index: {}]
  %s8 = sld [smem:[#allocation0]]
  $region38: #{ffn_forward.1} parent=0
    _
  %s10 = ssub.s32 1, %s8
  %s11 = scalar_select 0, %s10, %s8
  // Predicated region
  $region2: #{ffn_forward.1} parent=0 // pred_check
    _
  $region3: #{ffn_forward.1} parent=0 // pred_check_branch
    %13 = sbr.rel (0) target = $region5
  $region4: #{ffn_forward.1} parent=0 // pred_region
    _
  $region5: #{ffn_forward.1} parent=0 // pred_fallthru
    _
  // Predicated region
  $region6: #{ffn_forward.1} parent=0 // pred_check
    _
  $region7: #{ffn_forward.1} parent=0 // pred_check_branch
    %15 = sbr.rel (0) target = $region9
  $region8: #{ffn_forward.1} parent=0 // pred_region
    _
  $region9: #{ffn_forward.1} parent=0 // pred_fallthru
    _
  // Predicated region
  $region10: #{ffn_forward.1} parent=0 // pred_check
    _
  $region11: #{ffn_forward.1} parent=0 // pred_check_branch
    %17 = sbr.rel (0) target = $region13
  $region12: #{ffn_forward.1} parent=0 // pred_region
    _
  $region13: #{ffn_forward.1} parent=0 // pred_fallthru
    _
  // Predicated region
  $region14: #{ffn_forward.1} parent=0 // pred_check
    _
  $region15: #{ffn_forward.1} parent=0 // pred_check_branch
    %19 = sbr.rel (0) target = $region17
  $region16: #{ffn_forward.1} parent=0 // pred_region
    _
  $region17: #{ffn_forward.1} parent=0 // pred_fallthru
    _
  // Predicated region
  $region18: #{ffn_forward.1} parent=0 // pred_check
    _
  $region19: #{ffn_forward.1} parent=0 // pred_check_branch
    %21 = sbr.rel (0) target = $region21
  $region20: #{ffn_forward.1} parent=0 // pred_region
    _
  $region21: #{ffn_forward.1} parent=0 // pred_fallthru
    _
  // Predicated region
  $region22: #{ffn_forward.1} parent=0 // pred_check
    _
  $region23: #{ffn_forward.1} parent=0 // pred_check_branch
    %23 = sbr.rel (0) target = $region25
  $region24: #{ffn_forward.1} parent=0 // pred_region
    _
  $region25: #{ffn_forward.1} parent=0 // pred_fallthru
    _
  // Predicated region
  $region26: #{ffn_forward.1} parent=0 // pred_check
    _
  $region27: #{ffn_forward.1} parent=0 // pred_check_branch
    %25 = sbr.rel (0) target = $region29
  $region28: #{ffn_forward.1} parent=0 // pred_region
    _
  $region29: #{ffn_forward.1} parent=0 // pred_fallthru
    _
  %v27 = vld [vmem:[%s0] sm:$0x7]
  %v29 = vlaneseq
  %v30 = vshrl.u32 %v29, 7
  %v31 = vsub.s32 0, %v30
  %v32 = vrot.slane %v27, %v31
  %v33 = vlaneseq
  %v34 = vshrl.u32 %v33, 7
  %v35 = vsub.s32 1, %v34
  %v36 = vrot.slane %v27, %v35
  %v37 = vlaneseq
  %v38 = vshrl.u32 %v37, 7
  %v39 = vsub.s32 2, %v38
  %v40 = vrot.slane %v27, %v39
  %v44 = vpack.c.bf16 %v32, %v32
  %v45 = vpack.c.bf16 %v36, %v36
  %v46 = vpack.c.bf16 %v40, %v40
  %v47 = vld [vmem:[%s1] sm:$0xff]
  %v48 = vld [vmem:[%s1 + $0x8] sm:$0xf]
  %v49 = vld [vmem:[%s1 + $0xc] sm:$0xff]
  %v50 = vld [vmem:[%s1 + $0x14] sm:$0xf]
  %v51 = vld [vmem:[%s1 + $0x18] sm:$0xff]
  %v52 = vld [vmem:[%s1 + $0x20] sm:$0xf]
  %v53 = vld [vmem:[%s1 + $0x24] sm:$0xff]
  %v54 = vld [vmem:[%s1 + $0x2c] sm:$0xf]
  %v55 = vld [vmem:[%s1 + $0x30] sm:$0xff]
  %v56 = vld [vmem:[%s1 + $0x38] sm:$0xf]
  %v57 = vld [vmem:[%s1 + $0x3c] sm:$0xff]
  %v58 = vld [vmem:[%s1 + $0x44] sm:$0xf]
  %v59 = vld [vmem:[%s1 + $0x48] sm:$0xff]
  %v60 = vld [vmem:[%s1 + $0x50] sm:$0xf]
  %v61 = vld [vmem:[%s1 + $0x54] sm:$0xff]
  %v62 = vld [vmem:[%s1 + $0x5c] sm:$0xf]
  %v63 = vld [vmem:[%s1 + $0x60] sm:$0xff]
  %v64 = vld [vmem:[%s1 + $0x68] sm:$0xf]
  %v65 = vld [vmem:[%s1 + $0x6c] sm:$0xff]
  %v66 = vld [vmem:[%s1 + $0x74] sm:$0xf]
  %v67 = vld [vmem:[%s1 + $0x78] sm:$0xff]
  %v68 = vld [vmem:[%s1 + $0x80] sm:$0xf]
  %v69 = vld [vmem:[%s1 + $0x84] sm:$0xff]
  %v70 = vld [vmem:[%s1 + $0x8c] sm:$0xf]
  %v71 = vld [vmem:[%s1 + $0x90] sm:$0xff]
  %v72 = vld [vmem:[%s1 + $0x98] sm:$0xf]
  %v73 = vld [vmem:[%s1 + $0x9c] sm:$0xff]
  %v74 = vld [vmem:[%s1 + $0xa4] sm:$0xf]
  %v75 = vld [vmem:[%s1 + $0xa8] sm:$0xff]
  %v76 = vld [vmem:[%s1 + $0xb0] sm:$0xf]
  %v77 = vld [vmem:[%s1 + $0xb4] sm:$0xff]
  %v78 = vld [vmem:[%s1 + $0xbc] sm:$0xf]
  %v79 = vld [vmem:[%s1 + $0xc0] sm:$0xff]
  %v80 = vld [vmem:[%s1 + $0xc8] sm:$0xf]
  %v81 = vld [vmem:[%s1 + $0xcc] sm:$0xff]
  %v82 = vld [vmem:[%s1 + $0xd4] sm:$0xf]
  %v83 = vld [vmem:[%s1 + $0xd8] sm:$0xff]
  %v84 = vld [vmem:[%s1 + $0xe0] sm:$0xf]
  %v85 = vld [vmem:[%s1 + $0xe4] sm:$0xff]
  %v86 = vld [vmem:[%s1 + $0xec] sm:$0xf]
  %v87 = vld [vmem:[%s1 + $0xf0] sm:$0xff]
  %v88 = vld [vmem:[%s1 + $0xf8] sm:$0xf]
  %v89 = vld [vmem:[%s1 + $0xfc] sm:$0xff]
  %v90 = vld [vmem:[%s1 + $0x104] sm:$0xf]
  %v91 = vld [vmem:[%s1 + $0x108] sm:$0xff]
  %v92 = vld [vmem:[%s1 + $0x110] sm:$0xf]
  %v93 = vld [vmem:[%s1 + $0x114] sm:$0xff]
  %v94 = vld [vmem:[%s1 + $0x11c] sm:$0xf]
  %v95 = vld [vmem:[%s1 + $0x120] sm:$0xff]
  %v96 = vld [vmem:[%s1 + $0x128] sm:$0xf]
  %v97 = vld [vmem:[%s1 + $0x12c] sm:$0xff]
  %v98 = vld [vmem:[%s1 + $0x134] sm:$0xf]
  %v99 = vld [vmem:[%s1 + $0x138] sm:$0xff]
  %v100 = vld [vmem:[%s1 + $0x140] sm:$0xf]
  %v101 = vld [vmem:[%s1 + $0x144] sm:$0xff]
  %v102 = vld [vmem:[%s1 + $0x14c] sm:$0xf]
  %v103 = vld [vmem:[%s1 + $0x150] sm:$0xff]
  %v104 = vld [vmem:[%s1 + $0x158] sm:$0xf]
  %v105 = vld [vmem:[%s1 + $0x15c] sm:$0xff]
  %v106 = vld [vmem:[%s1 + $0x164] sm:$0xf]
  %v107 = vld [vmem:[%s1 + $0x168] sm:$0xff]
  %v108 = vld [vmem:[%s1 + $0x170] sm:$0xf]
  %v109 = vld [vmem:[%s1 + $0x174] sm:$0xff]
  %v110 = vld [vmem:[%s1 + $0x17c] sm:$0xf]
  %v111 = vld [vmem:[%s1 + $0x180] sm:$0xff]
  %v112 = vld [vmem:[%s1 + $0x188] sm:$0xf]
  %v113 = vld [vmem:[%s1 + $0x18c] sm:$0xff]
  %v114 = vld [vmem:[%s1 + $0x194] sm:$0xf]
  %v115 = vld [vmem:[%s1 + $0x198] sm:$0xff]
  %v116 = vld [vmem:[%s1 + $0x1a0] sm:$0xf]
  %v117 = vld [vmem:[%s1 + $0x1a4] sm:$0xff]
  %v118 = vld [vmem:[%s1 + $0x1ac] sm:$0xf]
  %v119 = vld [vmem:[%s1 + $0x1b0] sm:$0xff]
  %v120 = vld [vmem:[%s1 + $0x1b8] sm:$0xf]
  %v121 = vld [vmem:[%s1 + $0x1bc] sm:$0xff]
  %v122 = vld [vmem:[%s1 + $0x1c4] sm:$0xf]
  %v123 = vld [vmem:[%s1 + $0x1c8] sm:$0xff]
  %v124 = vld [vmem:[%s1 + $0x1d0] sm:$0xf]
  %v125 = vld [vmem:[%s1 + $0x1d4] sm:$0xff]
  %v126 = vld [vmem:[%s1 + $0x1dc] sm:$0xf]
  %v127 = vld [vmem:[%s1 + $0x1e0] sm:$0xff]
  %v128 = vld [vmem:[%s1 + $0x1e8] sm:$0xf]
  %v129 = vld [vmem:[%s1 + $0x1ec] sm:$0xff]
  %v130 = vld [vmem:[%s1 + $0x1f4] sm:$0xf]
  %v131 = vld [vmem:[%s1 + $0x1f8] sm:$0xff]
  %v132 = vld [vmem:[%s1 + $0x200] sm:$0xf]
  %v133 = vld [vmem:[%s1 + $0x204] sm:$0xff]
  %v134 = vld [vmem:[%s1 + $0x20c] sm:$0xf]
  %v135 = vld [vmem:[%s1 + $0x210] sm:$0xff]
  %v136 = vld [vmem:[%s1 + $0x218] sm:$0xf]
  %v137 = vld [vmem:[%s1 + $0x21c] sm:$0xff]
  %v138 = vld [vmem:[%s1 + $0x224] sm:$0xf]
  %v139 = vld [vmem:[%s1 + $0x228] sm:$0xff]
  %v140 = vld [vmem:[%s1 + $0x230] sm:$0xf]
  %v141 = vld [vmem:[%s1 + $0x234] sm:$0xff]
  %v142 = vld [vmem:[%s1 + $0x23c] sm:$0xf]
  %v143 = vld [vmem:[%s2] sm:$0x7]
  %v240 = vunpack.c.l.b16 %v47
  %v241 = vunpack.c.h.b16 %v47
  %v242 = vunpack.c.l.b16 %v48
  %v243 = vunpack.c.l.b16 %v49
  %v244 = vunpack.c.h.b16 %v49
  %v245 = vunpack.c.l.b16 %v50
  %v246 = vunpack.c.l.b16 %v51
  %v247 = vunpack.c.h.b16 %v51
  %v248 = vunpack.c.l.b16 %v52
  %v249 = vunpack.c.l.b16 %v53
  %v250 = vunpack.c.h.b16 %v53
  %v251 = vunpack.c.l.b16 %v54
  %v252 = vunpack.c.l.b16 %v55
  %v253 = vunpack.c.h.b16 %v55
  %v254 = vunpack.c.l.b16 %v56
  %v255 = vunpack.c.l.b16 %v57
  %v256 = vunpack.c.h.b16 %v57
  %v257 = vunpack.c.l.b16 %v58
  %v258 = vunpack.c.l.b16 %v59
  %v259 = vunpack.c.h.b16 %v59
  %v260 = vunpack.c.l.b16 %v60
  %v261 = vunpack.c.l.b16 %v61
  %v262 = vunpack.c.h.b16 %v61
  %v263 = vunpack.c.l.b16 %v62
  %v264 = vunpack.c.l.b16 %v63
  %v265 = vunpack.c.h.b16 %v63
  %v266 = vunpack.c.l.b16 %v64
  %v267 = vunpack.c.l.b16 %v65
  %v268 = vunpack.c.h.b16 %v65
  %v269 = vunpack.c.l.b16 %v66
  %v270 = vunpack.c.l.b16 %v67
  %v271 = vunpack.c.h.b16 %v67
  %v272 = vunpack.c.l.b16 %v68
  %v273 = vunpack.c.l.b16 %v69
  %v274 = vunpack.c.h.b16 %v69
  %v275 = vunpack.c.l.b16 %v70
  %v276 = vunpack.c.l.b16 %v71
  %v277 = vunpack.c.h.b16 %v71
  %v278 = vunpack.c.l.b16 %v72
  %v279 = vunpack.c.l.b16 %v73
  %v280 = vunpack.c.h.b16 %v73
  %v281 = vunpack.c.l.b16 %v74
  %v282 = vunpack.c.l.b16 %v75
  %v283 = vunpack.c.h.b16 %v75
  %v284 = vunpack.c.l.b16 %v76
  %v285 = vunpack.c.l.b16 %v77
  %v286 = vunpack.c.h.b16 %v77
  %v287 = vunpack.c.l.b16 %v78
  %v288 = vunpack.c.l.b16 %v79
  %v289 = vunpack.c.h.b16 %v79
  %v290 = vunpack.c.l.b16 %v80
  %v291 = vunpack.c.l.b16 %v81
  %v292 = vunpack.c.h.b16 %v81
  %v293 = vunpack.c.l.b16 %v82
  %v294 = vunpack.c.l.b16 %v83
  %v295 = vunpack.c.h.b16 %v83
  %v296 = vunpack.c.l.b16 %v84
  %v297 = vunpack.c.l.b16 %v85
  %v298 = vunpack.c.h.b16 %v85
  %v299 = vunpack.c.l.b16 %v86
  %v300 = vunpack.c.l.b16 %v87
  %v301 = vunpack.c.h.b16 %v87
  %v302 = vunpack.c.l.b16 %v88
  %v303 = vunpack.c.l.b16 %v89
  %v304 = vunpack.c.h.b16 %v89
  %v305 = vunpack.c.l.b16 %v90
  %v306 = vunpack.c.l.b16 %v91
  %v307 = vunpack.c.h.b16 %v91
  %v308 = vunpack.c.l.b16 %v92
  %v309 = vunpack.c.l.b16 %v93
  %v310 = vunpack.c.h.b16 %v93
  %v311 = vunpack.c.l.b16 %v94
  %v312 = vunpack.c.l.b16 %v95
  %v313 = vunpack.c.h.b16 %v95
  %v314 = vunpack.c.l.b16 %v96
  %v315 = vunpack.c.l.b16 %v97
  %v316 = vunpack.c.h.b16 %v97
  %v317 = vunpack.c.l.b16 %v98
  %v318 = vunpack.c.l.b16 %v99
  %v319 = vunpack.c.h.b16 %v99
  %v320 = vunpack.c.l.b16 %v100
  %v321 = vunpack.c.l.b16 %v101
  %v322 = vunpack.c.h.b16 %v101
  %v323 = vunpack.c.l.b16 %v102
  %v324 = vunpack.c.l.b16 %v103
  %v325 = vunpack.c.h.b16 %v103
  %v326 = vunpack.c.l.b16 %v104
  %v327 = vunpack.c.l.b16 %v105
  %v328 = vunpack.c.h.b16 %v105
  %v329 = vunpack.c.l.b16 %v106
  %v330 = vunpack.c.l.b16 %v107
  %v331 = vunpack.c.h.b16 %v107
  %v332 = vunpack.c.l.b16 %v108
  %v333 = vunpack.c.l.b16 %v109
  %v334 = vunpack.c.h.b16 %v109
  %v335 = vunpack.c.l.b16 %v110
  %v336 = vunpack.c.l.b16 %v111
  %v337 = vunpack.c.h.b16 %v111
  %v338 = vunpack.c.l.b16 %v112
  %v339 = vunpack.c.l.b16 %v113
  %v340 = vunpack.c.h.b16 %v113
  %v341 = vunpack.c.l.b16 %v114
  %v342 = vunpack.c.l.b16 %v115
  %v343 = vunpack.c.h.b16 %v115
  %v344 = vunpack.c.l.b16 %v116
  %v345 = vunpack.c.l.b16 %v117
  %v346 = vunpack.c.h.b16 %v117
  %v347 = vunpack.c.l.b16 %v118
  %v348 = vunpack.c.l.b16 %v119
  %v349 = vunpack.c.h.b16 %v119
  %v350 = vunpack.c.l.b16 %v120
  %v351 = vunpack.c.l.b16 %v121
  %v352 = vunpack.c.h.b16 %v121
  %v353 = vunpack.c.l.b16 %v122
  %v354 = vunpack.c.l.b16 %v123
  %v355 = vunpack.c.h.b16 %v123
  %v356 = vunpack.c.l.b16 %v124
  %v357 = vunpack.c.l.b16 %v125
  %v358 = vunpack.c.h.b16 %v125
  %v359 = vunpack.c.l.b16 %v126
  %v360 = vunpack.c.l.b16 %v127
  %v361 = vunpack.c.h.b16 %v127
  %v362 = vunpack.c.l.b16 %v128
  %v363 = vunpack.c.l.b16 %v129
  %v364 = vunpack.c.h.b16 %v129
  %v365 = vunpack.c.l.b16 %v130
  %v366 = vunpack.c.l.b16 %v131
  %v367 = vunpack.c.h.b16 %v131
  %v368 = vunpack.c.l.b16 %v132
  %v369 = vunpack.c.l.b16 %v133
  %v370 = vunpack.c.h.b16 %v133
  %v371 = vunpack.c.l.b16 %v134
  %v372 = vunpack.c.l.b16 %v135
  %v373 = vunpack.c.h.b16 %v135
  %v374 = vunpack.c.l.b16 %v136
  %v375 = vunpack.c.l.b16 %v137
  %v376 = vunpack.c.h.b16 %v137
  %v377 = vunpack.c.l.b16 %v138
  %v378 = vunpack.c.l.b16 %v139
  %v379 = vunpack.c.h.b16 %v139
  %v380 = vunpack.c.l.b16 %v140
  %v381 = vunpack.c.l.b16 %v141
  %v382 = vunpack.c.h.b16 %v141
  %v383 = vunpack.c.l.b16 %v142
  %v384 = vpack.c.b16 %v243, %v240
  %v385 = vpack.c.b16 %v244, %v241
  %v386 = vpack.c.b16 %v245, %v242
  %v387 = vpack.c.b16 %v249, %v246
  %v388 = vpack.c.b16 %v250, %v247
  %v389 = vpack.c.b16 %v251, %v248
  %v390 = vpack.c.b16 %v255, %v252
  %v391 = vpack.c.b16 %v256, %v253
  %v392 = vpack.c.b16 %v257, %v254
  %v393 = vpack.c.b16 %v261, %v258
  %v394 = vpack.c.b16 %v262, %v259
  %v395 = vpack.c.b16 %v263, %v260
  %v396 = vpack.c.b16 %v267, %v264
  %v397 = vpack.c.b16 %v268, %v265
  %v398 = vpack.c.b16 %v269, %v266
  %v399 = vpack.c.b16 %v273, %v270
  %v400 = vpack.c.b16 %v274, %v271
  %v401 = vpack.c.b16 %v275, %v272
  %v402 = vpack.c.b16 %v279, %v276
  %v403 = vpack.c.b16 %v280, %v277
  %v404 = vpack.c.b16 %v281, %v278
  %v405 = vpack.c.b16 %v285, %v282
  %v406 = vpack.c.b16 %v286, %v283
  %v407 = vpack.c.b16 %v287, %v284
  %v408 = vpack.c.b16 %v291, %v288
  %v409 = vpack.c.b16 %v292, %v289
  %v410 = vpack.c.b16 %v293, %v290
  %v411 = vpack.c.b16 %v297, %v294
  %v412 = vpack.c.b16 %v298, %v295
  %v413 = vpack.c.b16 %v299, %v296
  %v414 = vpack.c.b16 %v303, %v300
  %v415 = vpack.c.b16 %v304, %v301
  %v416 = vpack.c.b16 %v305, %v302
  %v417 = vpack.c.b16 %v309, %v306
  %v418 = vpack.c.b16 %v310, %v307
  %v419 = vpack.c.b16 %v311, %v308
  %v420 = vpack.c.b16 %v315, %v312
  %v421 = vpack.c.b16 %v316, %v313
  %v422 = vpack.c.b16 %v317, %v314
  %v423 = vpack.c.b16 %v321, %v318
  %v424 = vpack.c.b16 %v322, %v319
  %v425 = vpack.c.b16 %v323, %v320
  %v426 = vpack.c.b16 %v327, %v324
  %v427 = vpack.c.b16 %v328, %v325
  %v428 = vpack.c.b16 %v329, %v326
  %v429 = vpack.c.b16 %v333, %v330
  %v430 = vpack.c.b16 %v334, %v331
  %v431 = vpack.c.b16 %v335, %v332
  %v432 = vpack.c.b16 %v339, %v336
  %v433 = vpack.c.b16 %v340, %v337
  %v434 = vpack.c.b16 %v341, %v338
  %v435 = vpack.c.b16 %v345, %v342
  %v436 = vpack.c.b16 %v346, %v343
  %v437 = vpack.c.b16 %v347, %v344
  %v438 = vpack.c.b16 %v351, %v348
  %v439 = vpack.c.b16 %v352, %v349
  %v440 = vpack.c.b16 %v353, %v350
  %v441 = vpack.c.b16 %v357, %v354
  %v442 = vpack.c.b16 %v358, %v355
  %v443 = vpack.c.b16 %v359, %v356
  %v444 = vpack.c.b16 %v363, %v360
  %v445 = vpack.c.b16 %v364, %v361
  %v446 = vpack.c.b16 %v365, %v362
  %v447 = vpack.c.b16 %v369, %v366
  %v448 = vpack.c.b16 %v370, %v367
  %v449 = vpack.c.b16 %v371, %v368
  %v450 = vpack.c.b16 %v375, %v372
  %v451 = vpack.c.b16 %v376, %v373
  %v452 = vpack.c.b16 %v377, %v374
  %v453 = vpack.c.b16 %v381, %v378
  %v454 = vpack.c.b16 %v382, %v379
  %v455 = vpack.c.b16 %v383, %v380
  %v529 = vlaneseq
  %v530 = vshrl.u32 %v529, 7
  %v531 = vsub.s32 0, %v530
  %v532 = vrot.slane %v143, %v531
  %v533 = vlaneseq
  %v534 = vshrl.u32 %v533, 7
  %v535 = vsub.s32 1, %v534
  %v536 = vrot.slane %v143, %v535
  %v537 = vlaneseq
  %v538 = vshrl.u32 %v537, 7
  %v539 = vsub.s32 2, %v538
  %v540 = vrot.slane %v143, %v539
  %544 = vmatprep.subr.bf16.mxu0 %v406
  %545 = vmatpush1.bf16.msra.mxu0 %v405
  %546 = vmatprep.subr.bf16.mxu0 %v403
  %547 = vmatpush1.bf16.msra.mxu0 %v402
  %548 = vmatprep.subr.bf16.mxu0 %v400
  %549 = vmatpush1.bf16.msra.mxu0 %v399
  %550 = vmatprep.subr.bf16.mxu0 %v397
  %551 = vmatpush1.bf16.msra.mxu0 %v396
  %552 = vmatprep.subr.bf16.mxu0 %v394
  %553 = vmatpush1.bf16.msra.mxu0 %v393
  %554 = vmatprep.subr.bf16.mxu0 %v391
  %555 = vmatpush1.bf16.msra.mxu0 %v390
  %556 = vmatprep.subr.bf16.mxu0 %v388
  %557 = vmatpush1.bf16.msra.mxu0 %v387
  %558 = vmatprep.subr.bf16.mxu0 %v385
  %559 = vmatpush1.bf16.msra.mxu0 %v384
  %560 = vmatprep.subr.bf16.mxu0 %v430
  %561 = vmatpush2.bf16.msra.mxu0 %v429
  %562 = vmatprep.subr.bf16.mxu0 %v427
  %563 = vmatpush2.bf16.msra.mxu0 %v426
  %564 = vmatprep.subr.bf16.mxu0 %v424
  %565 = vmatpush2.bf16.msra.mxu0 %v423
  %566 = vmatprep.subr.bf16.mxu0 %v421
  %567 = vmatpush2.bf16.msra.mxu0 %v420
  %568 = vmatprep.subr.bf16.mxu0 %v418
  %569 = vmatpush2.bf16.msra.mxu0 %v417
  %570 = vmatprep.subr.bf16.mxu0 %v415
  %571 = vmatpush2.bf16.msra.mxu0 %v414
  %572 = vmatprep.subr.bf16.mxu0 %v412
  %573 = vmatpush2.bf16.msra.mxu0 %v411
  %574 = vmatprep.subr.bf16.mxu0 %v409
  %575 = vmatpush2.bf16.msra.mxu0 %v408
  %576 = vmatprep.mubr.bf16.mxu0 %v45
  %577 = vmatmul.mubr.bf16.gmra.mxu0 %v44
  %v578 = vpop.f32.mrf.mxu0
  %v579 = vadd.f32 %v532, %v578
  %v580 = vpop.f32.mrf.mxu0
  %v581 = vadd.f32 %v536, %v580
  %v582 = vpop.f32.mrf.mxu0
  %v583 = vpop.f32.mrf.mxu0
  %584 = vdwg.mxu0
  %585 = vmatprep.subr.bf16.mxu0 %v454
  %586 = vmatpush1.bf16.msra.mxu0 %v453
  %587 = vmatprep.subr.bf16.mxu0 %v451
  %588 = vmatpush1.bf16.msra.mxu0 %v450
  %589 = vmatprep.subr.bf16.mxu0 %v448
  %590 = vmatpush1.bf16.msra.mxu0 %v447
  %591 = vmatprep.subr.bf16.mxu0 %v445
  %592 = vmatpush1.bf16.msra.mxu0 %v444
  %593 = vmatprep.subr.bf16.mxu0 %v442
  %594 = vmatpush1.bf16.msra.mxu0 %v441
  %595 = vmatprep.subr.bf16.mxu0 %v439
  %596 = vmatpush1.bf16.msra.mxu0 %v438
  %597 = vmatprep.subr.bf16.mxu0 %v436
  %598 = vmatpush1.bf16.msra.mxu0 %v435
  %599 = vmatprep.subr.bf16.mxu0 %v433
  %600 = vmatpush1.bf16.msra.mxu0 %v432
  %601 = vmatprep.subr.bf16.mxu0 0
  %602 = vmatpush2.bf16.msra.mxu0 0
  %603 = vmatprep.subr.bf16.mxu0 0
  %604 = vmatpush2.bf16.msra.mxu0 0
  %605 = vmatprep.subr.bf16.mxu0 0
  %606 = vmatpush2.bf16.msra.mxu0 0
  %607 = vmatprep.subr.bf16.mxu0 0
  %608 = vmatpush2.bf16.msra.mxu0 0
  %609 = vmatprep.subr.bf16.mxu0 0
  %610 = vmatpush2.bf16.msra.mxu0 0
  %611 = vmatprep.subr.bf16.mxu0 0
  %612 = vmatpush2.bf16.msra.mxu0 0
  %613 = vmatprep.subr.bf16.mxu0 0
  %614 = vmatpush2.bf16.msra.mxu0 0
  %615 = vmatprep.subr.bf16.mxu0 0
  %616 = vmatpush2.bf16.msra.mxu0 0
  %617 = vmatprep.mubr.bf16.mxu0 0
  %618 = vmatmul.mubr.bf16.gmra.mxu0 %v46
  %v619 = vpop.f32.mrf.mxu0
  %v620 = vadd.f32 %v579, %v619
  %v621 = vpop.f32.mrf.mxu0
  %v622 = vadd.f32 %v581, %v621
  %v623 = vpop.f32.mrf.mxu0
  %v624 = vpop.f32.mrf.mxu0
  %625 = vdwg.mxu0
  %626 = vmatprep.subr.bf16.mxu0 0
  %627 = vmatpush1.bf16.msra.mxu0 %v407
  %628 = vmatprep.subr.bf16.mxu0 0
  %629 = vmatpush1.bf16.msra.mxu0 %v404
  %630 = vmatprep.subr.bf16.mxu0 0
  %631 = vmatpush1.bf16.msra.mxu0 %v401
  %632 = vmatprep.subr.bf16.mxu0 0
  %633 = vmatpush1.bf16.msra.mxu0 %v398
  %634 = vmatprep.subr.bf16.mxu0 0
  %635 = vmatpush1.bf16.msra.mxu0 %v395
  %636 = vmatprep.subr.bf16.mxu0 0
  %637 = vmatpush1.bf16.msra.mxu0 %v392
  %638 = vmatprep.subr.bf16.mxu0 0
  %639 = vmatpush1.bf16.msra.mxu0 %v389
  %640 = vmatprep.subr.bf16.mxu0 0
  %641 = vmatpush1.bf16.msra.mxu0 %v386
  %642 = vmatprep.subr.bf16.mxu0 0
  %643 = vmatpush2.bf16.msra.mxu0 %v431
  %644 = vmatprep.subr.bf16.mxu0 0
  %645 = vmatpush2.bf16.msra.mxu0 %v428
  %646 = vmatprep.subr.bf16.mxu0 0
  %647 = vmatpush2.bf16.msra.mxu0 %v425
  %648 = vmatprep.subr.bf16.mxu0 0
  %649 = vmatpush2.bf16.msra.mxu0 %v422
  %650 = vmatprep.subr.bf16.mxu0 0
  %651 = vmatpush2.bf16.msra.mxu0 %v419
  %652 = vmatprep.subr.bf16.mxu0 0
  %653 = vmatpush2.bf16.msra.mxu0 %v416
  %654 = vmatprep.subr.bf16.mxu0 0
  %655 = vmatpush2.bf16.msra.mxu0 %v413
  %656 = vmatprep.subr.bf16.mxu0 0
  %657 = vmatpush2.bf16.msra.mxu0 %v410
  %658 = vmatprep.mubr.bf16.mxu0 %v45
  %659 = vmatmul.mubr.bf16.gmra.mxu0 %v44
  %v660 = vpop.f32.mrf.mxu0
  %v661 = vadd.f32 %v540, %v660
  %v662 = vpop.f32.mrf.mxu0
  %v663 = vpop.f32.mrf.mxu0
  %v664 = vpop.f32.mrf.mxu0
  %665 = vdwg.mxu0
  %666 = vmatprep.subr.bf16.mxu0 0
  %667 = vmatpush1.bf16.msra.mxu0 %v455
  %668 = vmatprep.subr.bf16.mxu0 0
  %669 = vmatpush1.bf16.msra.mxu0 %v452
  %670 = vmatprep.subr.bf16.mxu0 0
  %671 = vmatpush1.bf16.msra.mxu0 %v449
  %672 = vmatprep.subr.bf16.mxu0 0
  %673 = vmatpush1.bf16.msra.mxu0 %v446
  %674 = vmatprep.subr.bf16.mxu0 0
  %675 = vmatpush1.bf16.msra.mxu0 %v443
  %676 = vmatprep.subr.bf16.mxu0 0
  %677 = vmatpush1.bf16.msra.mxu0 %v440
  %678 = vmatprep.subr.bf16.mxu0 0
  %679 = vmatpush1.bf16.msra.mxu0 %v437
  %680 = vmatprep.subr.bf16.mxu0 0
  %681 = vmatpush1.bf16.msra.mxu0 %v434
  %682 = vmatprep.subr.bf16.mxu0 0
  %683 = vmatpush2.bf16.msra.mxu0 0
  %684 = vmatprep.subr.bf16.mxu0 0
  %685 = vmatpush2.bf16.msra.mxu0 0
  %686 = vmatprep.subr.bf16.mxu0 0
  %687 = vmatpush2.bf16.msra.mxu0 0
  %688 = vmatprep.subr.bf16.mxu0 0
  %689 = vmatpush2.bf16.msra.mxu0 0
  %690 = vmatprep.subr.bf16.mxu0 0
  %691 = vmatpush2.bf16.msra.mxu0 0
  %692 = vmatprep.subr.bf16.mxu0 0
  %693 = vmatpush2.bf16.msra.mxu0 0
  %694 = vmatprep.subr.bf16.mxu0 0
  %695 = vmatpush2.bf16.msra.mxu0 0
  %696 = vmatprep.subr.bf16.mxu0 0
  %697 = vmatpush2.bf16.msra.mxu0 0
  %698 = vmatprep.mubr.bf16.mxu0 0
  %699 = vmatmul.mubr.bf16.gmra.mxu0 %v46
  %v700 = vpop.f32.mrf.mxu0
  %v701 = vadd.f32 %v661, %v700
  %v702 = vpop.f32.mrf.mxu0
  %v703 = vpop.f32.mrf.mxu0
  %v704 = vpop.f32.mrf.mxu0
  %705 = vdwg.mxu0
  %v706 = vmax.f32 %v620, 0.0
  %v707 = vmax.f32 %v622, 0.0
  %v708 = vmax.f32 %v701, 0.0
  %v709 = vpack.c.bf16 %v706, %v706
  %v710 = vpack.c.bf16 %v707, %v707
  %v711 = vpack.c.bf16 %v708, %v708
  %v712 = vld [vmem:[%s3] sm:$0xff]
  %v713 = vld [vmem:[%s3 + $0x8] sm:$0xf]
  %v714 = vld [vmem:[%s3 + $0xc] sm:$0xff]
  %v715 = vld [vmem:[%s3 + $0x14] sm:$0xf]
  %v716 = vld [vmem:[%s3 + $0x18] sm:$0xff]
  %v717 = vld [vmem:[%s3 + $0x20] sm:$0xf]
  %v718 = vld [vmem:[%s3 + $0x24] sm:$0xff]
  %v719 = vld [vmem:[%s3 + $0x2c] sm:$0xf]
  %v720 = vld [vmem:[%s3 + $0x30] sm:$0xff]
  %v721 = vld [vmem:[%s3 + $0x38] sm:$0xf]
  %v722 = vld [vmem:[%s3 + $0x3c] sm:$0xff]
  %v723 = vld [vmem:[%s3 + $0x44] sm:$0xf]
  %v724 = vld [vmem:[%s3 + $0x48] sm:$0xff]
  %v725 = vld [vmem:[%s3 + $0x50] sm:$0xf]
  %v726 = vld [vmem:[%s3 + $0x54] sm:$0xff]
  %v727 = vld [vmem:[%s3 + $0x5c] sm:$0xf]
  %v728 = vld [vmem:[%s3 + $0x60] sm:$0xff]
  %v729 = vld [vmem:[%s3 + $0x68] sm:$0xf]
  %v730 = vld [vmem:[%s3 + $0x6c] sm:$0xff]
  %v731 = vld [vmem:[%s3 + $0x74] sm:$0xf]
  %v732 = vld [vmem:[%s3 + $0x78] sm:$0xff]
  %v733 = vld [vmem:[%s3 + $0x80] sm:$0xf]
  %v734 = vld [vmem:[%s3 + $0x84] sm:$0xff]
  %v735 = vld [vmem:[%s3 + $0x8c] sm:$0xf]
  %v736 = vld [vmem:[%s3 + $0x90] sm:$0xff]
  %v737 = vld [vmem:[%s3 + $0x98] sm:$0xf]
  %v738 = vld [vmem:[%s3 + $0x9c] sm:$0xff]
  %v739 = vld [vmem:[%s3 + $0xa4] sm:$0xf]
  %v740 = vld [vmem:[%s3 + $0xa8] sm:$0xff]
  %v741 = vld [vmem:[%s3 + $0xb0] sm:$0xf]
  %v742 = vld [vmem:[%s3 + $0xb4] sm:$0xff]
  %v743 = vld [vmem:[%s3 + $0xbc] sm:$0xf]
  %v744 = vld [vmem:[%s3 + $0xc0] sm:$0xff]
  %v745 = vld [vmem:[%s3 + $0xc8] sm:$0xf]
  %v746 = vld [vmem:[%s3 + $0xcc] sm:$0xff]
  %v747 = vld [vmem:[%s3 + $0xd4] sm:$0xf]
  %v748 = vld [vmem:[%s3 + $0xd8] sm:$0xff]
  %v749 = vld [vmem:[%s3 + $0xe0] sm:$0xf]
  %v750 = vld [vmem:[%s3 + $0xe4] sm:$0xff]
  %v751 = vld [vmem:[%s3 + $0xec] sm:$0xf]
  %v752 = vld [vmem:[%s3 + $0xf0] sm:$0xff]
  %v753 = vld [vmem:[%s3 + $0xf8] sm:$0xf]
  %v754 = vld [vmem:[%s3 + $0xfc] sm:$0xff]
  %v755 = vld [vmem:[%s3 + $0x104] sm:$0xf]
  %v756 = vld [vmem:[%s3 + $0x108] sm:$0xff]
  %v757 = vld [vmem:[%s3 + $0x110] sm:$0xf]
  %v758 = vld [vmem:[%s3 + $0x114] sm:$0xff]
  %v759 = vld [vmem:[%s3 + $0x11c] sm:$0xf]
  %v760 = vld [vmem:[%s3 + $0x120] sm:$0xff]
  %v761 = vld [vmem:[%s3 + $0x128] sm:$0xf]
  %v762 = vld [vmem:[%s3 + $0x12c] sm:$0xff]
  %v763 = vld [vmem:[%s3 + $0x134] sm:$0xf]
  %v764 = vld [vmem:[%s3 + $0x138] sm:$0xff]
  %v765 = vld [vmem:[%s3 + $0x140] sm:$0xf]
  %v766 = vld [vmem:[%s3 + $0x144] sm:$0xff]
  %v767 = vld [vmem:[%s3 + $0x14c] sm:$0xf]
  %v768 = vld [vmem:[%s3 + $0x150] sm:$0xff]
  %v769 = vld [vmem:[%s3 + $0x158] sm:$0xf]
  %v770 = vld [vmem:[%s3 + $0x15c] sm:$0xff]
  %v771 = vld [vmem:[%s3 + $0x164] sm:$0xf]
  %v772 = vld [vmem:[%s3 + $0x168] sm:$0xff]
  %v773 = vld [vmem:[%s3 + $0x170] sm:$0xf]
  %v774 = vld [vmem:[%s3 + $0x174] sm:$0xff]
  %v775 = vld [vmem:[%s3 + $0x17c] sm:$0xf]
  %v776 = vld [vmem:[%s3 + $0x180] sm:$0xff]
  %v777 = vld [vmem:[%s3 + $0x188] sm:$0xf]
  %v778 = vld [vmem:[%s3 + $0x18c] sm:$0xff]
  %v779 = vld [vmem:[%s3 + $0x194] sm:$0xf]
  %v780 = vld [vmem:[%s3 + $0x198] sm:$0xff]
  %v781 = vld [vmem:[%s3 + $0x1a0] sm:$0xf]
  %v782 = vld [vmem:[%s3 + $0x1a4] sm:$0xff]
  %v783 = vld [vmem:[%s3 + $0x1ac] sm:$0xf]
  %v784 = vld [vmem:[%s3 + $0x1b0] sm:$0xff]
  %v785 = vld [vmem:[%s3 + $0x1b8] sm:$0xf]
  %v786 = vld [vmem:[%s3 + $0x1bc] sm:$0xff]
  %v787 = vld [vmem:[%s3 + $0x1c4] sm:$0xf]
  %v788 = vld [vmem:[%s3 + $0x1c8] sm:$0xff]
  %v789 = vld [vmem:[%s3 + $0x1d0] sm:$0xf]
  %v790 = vld [vmem:[%s3 + $0x1d4] sm:$0xff]
  %v791 = vld [vmem:[%s3 + $0x1dc] sm:$0xf]
  %v792 = vld [vmem:[%s3 + $0x1e0] sm:$0xff]
  %v793 = vld [vmem:[%s3 + $0x1e8] sm:$0xf]
  %v794 = vld [vmem:[%s3 + $0x1ec] sm:$0xff]
  %v795 = vld [vmem:[%s3 + $0x1f4] sm:$0xf]
  %v796 = vld [vmem:[%s3 + $0x1f8] sm:$0xff]
  %v797 = vld [vmem:[%s3 + $0x200] sm:$0xf]
  %v798 = vld [vmem:[%s3 + $0x204] sm:$0xff]
  %v799 = vld [vmem:[%s3 + $0x20c] sm:$0xf]
  %v800 = vld [vmem:[%s3 + $0x210] sm:$0xff]
  %v801 = vld [vmem:[%s3 + $0x218] sm:$0xf]
  %v802 = vld [vmem:[%s3 + $0x21c] sm:$0xff]
  %v803 = vld [vmem:[%s3 + $0x224] sm:$0xf]
  %v804 = vld [vmem:[%s3 + $0x228] sm:$0xff]
  %v805 = vld [vmem:[%s3 + $0x230] sm:$0xf]
  %v806 = vld [vmem:[%s3 + $0x234] sm:$0xff]
  %v807 = vld [vmem:[%s3 + $0x23c] sm:$0xf]
  %v808 = vld [vmem:[%s4] sm:$0x7]
  %v905 = vunpack.c.l.b16 %v712
  %v906 = vunpack.c.h.b16 %v712
  %v907 = vunpack.c.l.b16 %v713
  %v908 = vunpack.c.l.b16 %v714
  %v909 = vunpack.c.h.b16 %v714
  %v910 = vunpack.c.l.b16 %v715
  %v911 = vunpack.c.l.b16 %v716
  %v912 = vunpack.c.h.b16 %v716
  %v913 = vunpack.c.l.b16 %v717
  %v914 = vunpack.c.l.b16 %v718
  %v915 = vunpack.c.h.b16 %v718
  %v916 = vunpack.c.l.b16 %v719
  %v917 = vunpack.c.l.b16 %v720
  %v918 = vunpack.c.h.b16 %v720
  %v919 = vunpack.c.l.b16 %v721
  %v920 = vunpack.c.l.b16 %v722
  %v921 = vunpack.c.h.b16 %v722
  %v922 = vunpack.c.l.b16 %v723
  %v923 = vunpack.c.l.b16 %v724
  %v924 = vunpack.c.h.b16 %v724
  %v925 = vunpack.c.l.b16 %v725
  %v926 = vunpack.c.l.b16 %v726
  %v927 = vunpack.c.h.b16 %v726
  %v928 = vunpack.c.l.b16 %v727
  %v929 = vunpack.c.l.b16 %v728
  %v930 = vunpack.c.h.b16 %v728
  %v931 = vunpack.c.l.b16 %v729
  %v932 = vunpack.c.l.b16 %v730
  %v933 = vunpack.c.h.b16 %v730
  %v934 = vunpack.c.l.b16 %v731
  %v935 = vunpack.c.l.b16 %v732
  %v936 = vunpack.c.h.b16 %v732
  %v937 = vunpack.c.l.b16 %v733
  %v938 = vunpack.c.l.b16 %v734
  %v939 = vunpack.c.h.b16 %v734
  %v940 = vunpack.c.l.b16 %v735
  %v941 = vunpack.c.l.b16 %v736
  %v942 = vunpack.c.h.b16 %v736
  %v943 = vunpack.c.l.b16 %v737
  %v944 = vunpack.c.l.b16 %v738
  %v945 = vunpack.c.h.b16 %v738
  %v946 = vunpack.c.l.b16 %v739
  %v947 = vunpack.c.l.b16 %v740
  %v948 = vunpack.c.h.b16 %v740
  %v949 = vunpack.c.l.b16 %v741
  %v950 = vunpack.c.l.b16 %v742
  %v951 = vunpack.c.h.b16 %v742
  %v952 = vunpack.c.l.b16 %v743
  %v953 = vunpack.c.l.b16 %v744
  %v954 = vunpack.c.h.b16 %v744
  %v955 = vunpack.c.l.b16 %v745
  %v956 = vunpack.c.l.b16 %v746
  %v957 = vunpack.c.h.b16 %v746
  %v958 = vunpack.c.l.b16 %v747
  %v959 = vunpack.c.l.b16 %v748
  %v960 = vunpack.c.h.b16 %v748
  %v961 = vunpack.c.l.b16 %v749
  %v962 = vunpack.c.l.b16 %v750
  %v963 = vunpack.c.h.b16 %v750
  %v964 = vunpack.c.l.b16 %v751
  %v965 = vunpack.c.l.b16 %v752
  %v966 = vunpack.c.h.b16 %v752
  %v967 = vunpack.c.l.b16 %v753
  %v968 = vunpack.c.l.b16 %v754
  %v969 = vunpack.c.h.b16 %v754
  %v970 = vunpack.c.l.b16 %v755
  %v971 = vunpack.c.l.b16 %v756
  %v972 = vunpack.c.h.b16 %v756
  %v973 = vunpack.c.l.b16 %v757
  %v974 = vunpack.c.l.b16 %v758
  %v975 = vunpack.c.h.b16 %v758
  %v976 = vunpack.c.l.b16 %v759
  %v977 = vunpack.c.l.b16 %v760
  %v978 = vunpack.c.h.b16 %v760
  %v979 = vunpack.c.l.b16 %v761
  %v980 = vunpack.c.l.b16 %v762
  %v981 = vunpack.c.h.b16 %v762
  %v982 = vunpack.c.l.b16 %v763
  %v983 = vunpack.c.l.b16 %v764
  %v984 = vunpack.c.h.b16 %v764
  %v985 = vunpack.c.l.b16 %v765
  %v986 = vunpack.c.l.b16 %v766
  %v987 = vunpack.c.h.b16 %v766
  %v988 = vunpack.c.l.b16 %v767
  %v989 = vunpack.c.l.b16 %v768
  %v990 = vunpack.c.h.b16 %v768
  %v991 = vunpack.c.l.b16 %v769
  %v992 = vunpack.c.l.b16 %v770
  %v993 = vunpack.c.h.b16 %v770
  %v994 = vunpack.c.l.b16 %v771
  %v995 = vunpack.c.l.b16 %v772
  %v996 = vunpack.c.h.b16 %v772
  %v997 = vunpack.c.l.b16 %v773
  %v998 = vunpack.c.l.b16 %v774
  %v999 = vunpack.c.h.b16 %v774
  %v1000 = vunpack.c.l.b16 %v775
  %v1001 = vunpack.c.l.b16 %v776
  %v1002 = vunpack.c.h.b16 %v776
  %v1003 = vunpack.c.l.b16 %v777
  %v1004 = vunpack.c.l.b16 %v778
  %v1005 = vunpack.c.h.b16 %v778
  %v1006 = vunpack.c.l.b16 %v779
  %v1007 = vunpack.c.l.b16 %v780
  %v1008 = vunpack.c.h.b16 %v780
  %v1009 = vunpack.c.l.b16 %v781
  %v1010 = vunpack.c.l.b16 %v782
  %v1011 = vunpack.c.h.b16 %v782
  %v1012 = vunpack.c.l.b16 %v783
  %v1013 = vunpack.c.l.b16 %v784
  %v1014 = vunpack.c.h.b16 %v784
  %v1015 = vunpack.c.l.b16 %v785
  %v1016 = vunpack.c.l.b16 %v786
  %v1017 = vunpack.c.h.b16 %v786
  %v1018 = vunpack.c.l.b16 %v787
  %v1019 = vunpack.c.l.b16 %v788
  %v1020 = vunpack.c.h.b16 %v788
  %v1021 = vunpack.c.l.b16 %v789
  %v1022 = vunpack.c.l.b16 %v790
  %v1023 = vunpack.c.h.b16 %v790
  %v1024 = vunpack.c.l.b16 %v791
  %v1025 = vunpack.c.l.b16 %v792
  %v1026 = vunpack.c.h.b16 %v792
  %v1027 = vunpack.c.l.b16 %v793
  %v1028 = vunpack.c.l.b16 %v794
  %v1029 = vunpack.c.h.b16 %v794
  %v1030 = vunpack.c.l.b16 %v795
  %v1031 = vunpack.c.l.b16 %v796
  %v1032 = vunpack.c.h.b16 %v796
  %v1033 = vunpack.c.l.b16 %v797
  %v1034 = vunpack.c.l.b16 %v798
  %v1035 = vunpack.c.h.b16 %v798
  %v1036 = vunpack.c.l.b16 %v799
  %v1037 = vunpack.c.l.b16 %v800
  %v1038 = vunpack.c.h.b16 %v800
  %v1039 = vunpack.c.l.b16 %v801
  %v1040 = vunpack.c.l.b16 %v802
  %v1041 = vunpack.c.h.b16 %v802
  %v1042 = vunpack.c.l.b16 %v803
  %v1043 = vunpack.c.l.b16 %v804
  %v1044 = vunpack.c.h.b16 %v804
  %v1045 = vunpack.c.l.b16 %v805
  %v1046 = vunpack.c.l.b16 %v806
  %v1047 = vunpack.c.h.b16 %v806
  %v1048 = vunpack.c.l.b16 %v807
  %v1049 = vpack.c.b16 %v908, %v905
  %v1050 = vpack.c.b16 %v909, %v906
  %v1051 = vpack.c.b16 %v910, %v907
  %v1052 = vpack.c.b16 %v914, %v911
  %v1053 = vpack.c.b16 %v915, %v912
  %v1054 = vpack.c.b16 %v916, %v913
  %v1055 = vpack.c.b16 %v920, %v917
  %v1056 = vpack.c.b16 %v921, %v918
  %v1057 = vpack.c.b16 %v922, %v919
  %v1058 = vpack.c.b16 %v926, %v923
  %v1059 = vpack.c.b16 %v927, %v924
  %v1060 = vpack.c.b16 %v928, %v925
  %v1061 = vpack.c.b16 %v932, %v929
  %v1062 = vpack.c.b16 %v933, %v930
  %v1063 = vpack.c.b16 %v934, %v931
  %v1064 = vpack.c.b16 %v938, %v935
  %v1065 = vpack.c.b16 %v939, %v936
  %v1066 = vpack.c.b16 %v940, %v937
  %v1067 = vpack.c.b16 %v944, %v941
  %v1068 = vpack.c.b16 %v945, %v942
  %v1069 = vpack.c.b16 %v946, %v943
  %v1070 = vpack.c.b16 %v950, %v947
  %v1071 = vpack.c.b16 %v951, %v948
  %v1072 = vpack.c.b16 %v952, %v949
  %v1073 = vpack.c.b16 %v956, %v953
  %v1074 = vpack.c.b16 %v957, %v954
  %v1075 = vpack.c.b16 %v958, %v955
  %v1076 = vpack.c.b16 %v962, %v959
  %v1077 = vpack.c.b16 %v963, %v960
  %v1078 = vpack.c.b16 %v964, %v961
  %v1079 = vpack.c.b16 %v968, %v965
  %v1080 = vpack.c.b16 %v969, %v966
  %v1081 = vpack.c.b16 %v970, %v967
  %v1082 = vpack.c.b16 %v974, %v971
  %v1083 = vpack.c.b16 %v975, %v972
  %v1084 = vpack.c.b16 %v976, %v973
  %v1085 = vpack.c.b16 %v980, %v977
  %v1086 = vpack.c.b16 %v981, %v978
  %v1087 = vpack.c.b16 %v982, %v979
  %v1088 = vpack.c.b16 %v986, %v983
  %v1089 = vpack.c.b16 %v987, %v984
  %v1090 = vpack.c.b16 %v988, %v985
  %v1091 = vpack.c.b16 %v992, %v989
  %v1092 = vpack.c.b16 %v993, %v990
  %v1093 = vpack.c.b16 %v994, %v991
  %v1094 = vpack.c.b16 %v998, %v995
  %v1095 = vpack.c.b16 %v999, %v996
  %v1096 = vpack.c.b16 %v1000, %v997
  %v1097 = vpack.c.b16 %v1004, %v1001
  %v1098 = vpack.c.b16 %v1005, %v1002
  %v1099 = vpack.c.b16 %v1006, %v1003
  %v1100 = vpack.c.b16 %v1010, %v1007
  %v1101 = vpack.c.b16 %v1011, %v1008
  %v1102 = vpack.c.b16 %v1012, %v1009
  %v1103 = vpack.c.b16 %v1016, %v1013
  %v1104 = vpack.c.b16 %v1017, %v1014
  %v1105 = vpack.c.b16 %v1018, %v1015
  %v1106 = vpack.c.b16 %v1022, %v1019
  %v1107 = vpack.c.b16 %v1023, %v1020
  %v1108 = vpack.c.b16 %v1024, %v1021
  %v1109 = vpack.c.b16 %v1028, %v1025
  %v1110 = vpack.c.b16 %v1029, %v1026
  %v1111 = vpack.c.b16 %v1030, %v1027
  %v1112 = vpack.c.b16 %v1034, %v1031
  %v1113 = vpack.c.b16 %v1035, %v1032
  %v1114 = vpack.c.b16 %v1036, %v1033
  %v1115 = vpack.c.b16 %v1040, %v1037
  %v1116 = vpack.c.b16 %v1041, %v1038
  %v1117 = vpack.c.b16 %v1042, %v1039
  %v1118 = vpack.c.b16 %v1046, %v1043
  %v1119 = vpack.c.b16 %v1047, %v1044
  %v1120 = vpack.c.b16 %v1048, %v1045
  %v1194 = vlaneseq
  %v1195 = vshrl.u32 %v1194, 7
  %v1196 = vsub.s32 0, %v1195
  %v1197 = vrot.slane %v808, %v1196
  %v1198 = vlaneseq
  %v1199 = vshrl.u32 %v1198, 7
  %v1200 = vsub.s32 1, %v1199
  %v1201 = vrot.slane %v808, %v1200
  %v1202 = vlaneseq
  %v1203 = vshrl.u32 %v1202, 7
  %v1204 = vsub.s32 2, %v1203
  %v1205 = vrot.slane %v808, %v1204
  %1209 = vmatprep.subr.bf16.mxu0 %v1071
  %1210 = vmatpush1.bf16.msra.mxu0 %v1070
  %1211 = vmatprep.subr.bf16.mxu0 %v1068
  %1212 = vmatpush1.bf16.msra.mxu0 %v1067
  %1213 = vmatprep.subr.bf16.mxu0 %v1065
  %1214 = vmatpush1.bf16.msra.mxu0 %v1064
  %1215 = vmatprep.subr.bf16.mxu0 %v1062
  %1216 = vmatpush1.bf16.msra.mxu0 %v1061
  %1217 = vmatprep.subr.bf16.mxu0 %v1059
  %1218 = vmatpush1.bf16.msra.mxu0 %v1058
  %1219 = vmatprep.subr.bf16.mxu0 %v1056
  %1220 = vmatpush1.bf16.msra.mxu0 %v1055
  %1221 = vmatprep.subr.bf16.mxu0 %v1053
  %1222 = vmatpush1.bf16.msra.mxu0 %v1052
  %1223 = vmatprep.subr.bf16.mxu0 %v1050
  %1224 = vmatpush1.bf16.msra.mxu0 %v1049
  %1225 = vmatprep.subr.bf16.mxu0 %v1095
  %1226 = vmatpush2.bf16.msra.mxu0 %v1094
  %1227 = vmatprep.subr.bf16.mxu0 %v1092
  %1228 = vmatpush2.bf16.msra.mxu0 %v1091
  %1229 = vmatprep.subr.bf16.mxu0 %v1089
  %1230 = vmatpush2.bf16.msra.mxu0 %v1088
  %1231 = vmatprep.subr.bf16.mxu0 %v1086
  %1232 = vmatpush2.bf16.msra.mxu0 %v1085
  %1233 = vmatprep.subr.bf16.mxu0 %v1083
  %1234 = vmatpush2.bf16.msra.mxu0 %v1082
  %1235 = vmatprep.subr.bf16.mxu0 %v1080
  %1236 = vmatpush2.bf16.msra.mxu0 %v1079
  %1237 = vmatprep.subr.bf16.mxu0 %v1077
  %1238 = vmatpush2.bf16.msra.mxu0 %v1076
  %1239 = vmatprep.subr.bf16.mxu0 %v1074
  %1240 = vmatpush2.bf16.msra.mxu0 %v1073
  %1241 = vmatprep.mubr.bf16.mxu0 %v710
  %1242 = vmatmul.mubr.bf16.gmra.mxu0 %v709
  %v1243 = vpop.f32.mrf.mxu0
  %v1244 = vadd.f32 %v1197, %v1243
  %v1245 = vpop.f32.mrf.mxu0
  %v1246 = vadd.f32 %v1201, %v1245
  %v1247 = vpop.f32.mrf.mxu0
  %v1248 = vpop.f32.mrf.mxu0
  %1249 = vdwg.mxu0
  %1250 = vmatprep.subr.bf16.mxu0 %v1119
  %1251 = vmatpush1.bf16.msra.mxu0 %v1118
  %1252 = vmatprep.subr.bf16.mxu0 %v1116
  %1253 = vmatpush1.bf16.msra.mxu0 %v1115
  %1254 = vmatprep.subr.bf16.mxu0 %v1113
  %1255 = vmatpush1.bf16.msra.mxu0 %v1112
  %1256 = vmatprep.subr.bf16.mxu0 %v1110
  %1257 = vmatpush1.bf16.msra.mxu0 %v1109
  %1258 = vmatprep.subr.bf16.mxu0 %v1107
  %1259 = vmatpush1.bf16.msra.mxu0 %v1106
  %1260 = vmatprep.subr.bf16.mxu0 %v1104
  %1261 = vmatpush1.bf16.msra.mxu0 %v1103
  %1262 = vmatprep.subr.bf16.mxu0 %v1101
  %1263 = vmatpush1.bf16.msra.mxu0 %v1100
  %1264 = vmatprep.subr.bf16.mxu0 %v1098
  %1265 = vmatpush1.bf16.msra.mxu0 %v1097
  %1266 = vmatprep.subr.bf16.mxu0 0
  %1267 = vmatpush2.bf16.msra.mxu0 0
  %1268 = vmatprep.subr.bf16.mxu0 0
  %1269 = vmatpush2.bf16.msra.mxu0 0
  %1270 = vmatprep.subr.bf16.mxu0 0
  %1271 = vmatpush2.bf16.msra.mxu0 0
  %1272 = vmatprep.subr.bf16.mxu0 0
  %1273 = vmatpush2.bf16.msra.mxu0 0
  %1274 = vmatprep.subr.bf16.mxu0 0
  %1275 = vmatpush2.bf16.msra.mxu0 0
  %1276 = vmatprep.subr.bf16.mxu0 0
  %1277 = vmatpush2.bf16.msra.mxu0 0
  %1278 = vmatprep.subr.bf16.mxu0 0
  %1279 = vmatpush2.bf16.msra.mxu0 0
  %1280 = vmatprep.subr.bf16.mxu0 0
  %1281 = vmatpush2.bf16.msra.mxu0 0
  %1282 = vmatprep.mubr.bf16.mxu0 0
  %1283 = vmatmul.mubr.bf16.gmra.mxu0 %v711
  %v1284 = vpop.f32.mrf.mxu0
  %v1285 = vadd.f32 %v1244, %v1284
  %v1286 = vpop.f32.mrf.mxu0
  %v1287 = vadd.f32 %v1246, %v1286
  %v1288 = vpop.f32.mrf.mxu0
  %v1289 = vpop.f32.mrf.mxu0
  %1290 = vdwg.mxu0
  %1291 = vmatprep.subr.bf16.mxu0 0
  %1292 = vmatpush1.bf16.msra.mxu0 %v1072
  %1293 = vmatprep.subr.bf16.mxu0 0
  %1294 = vmatpush1.bf16.msra.mxu0 %v1069
  %1295 = vmatprep.subr.bf16.mxu0 0
  %1296 = vmatpush1.bf16.msra.mxu0 %v1066
  %1297 = vmatprep.subr.bf16.mxu0 0
  %1298 = vmatpush1.bf16.msra.mxu0 %v1063
  %1299 = vmatprep.subr.bf16.mxu0 0
  %1300 = vmatpush1.bf16.msra.mxu0 %v1060
  %1301 = vmatprep.subr.bf16.mxu0 0
  %1302 = vmatpush1.bf16.msra.mxu0 %v1057
  %1303 = vmatprep.subr.bf16.mxu0 0
  %1304 = vmatpush1.bf16.msra.mxu0 %v1054
  %1305 = vmatprep.subr.bf16.mxu0 0
  %1306 = vmatpush1.bf16.msra.mxu0 %v1051
  %1307 = vmatprep.subr.bf16.mxu0 0
  %1308 = vmatpush2.bf16.msra.mxu0 %v1096
  %1309 = vmatprep.subr.bf16.mxu0 0
  %1310 = vmatpush2.bf16.msra.mxu0 %v1093
  %1311 = vmatprep.subr.bf16.mxu0 0
  %1312 = vmatpush2.bf16.msra.mxu0 %v1090
  %1313 = vmatprep.subr.bf16.mxu0 0
  %1314 = vmatpush2.bf16.msra.mxu0 %v1087
  %1315 = vmatprep.subr.bf16.mxu0 0
  %1316 = vmatpush2.bf16.msra.mxu0 %v1084
  %1317 = vmatprep.subr.bf16.mxu0 0
  %1318 = vmatpush2.bf16.msra.mxu0 %v1081
  %1319 = vmatprep.subr.bf16.mxu0 0
  %1320 = vmatpush2.bf16.msra.mxu0 %v1078
  %1321 = vmatprep.subr.bf16.mxu0 0
  %1322 = vmatpush2.bf16.msra.mxu0 %v1075
  %1323 = vmatprep.mubr.bf16.mxu0 %v710
  %1324 = vmatmul.mubr.bf16.gmra.mxu0 %v709
  %v1325 = vpop.f32.mrf.mxu0
  %v1326 = vadd.f32 %v1205, %v1325
  %v1327 = vpop.f32.mrf.mxu0
  %v1328 = vpop.f32.mrf.mxu0
  %v1329 = vpop.f32.mrf.mxu0
  %1330 = vdwg.mxu0
  %1331 = vmatprep.subr.bf16.mxu0 0
  %1332 = vmatpush1.bf16.msra.mxu0 %v1120
  %1333 = vmatprep.subr.bf16.mxu0 0
  %1334 = vmatpush1.bf16.msra.mxu0 %v1117
  %1335 = vmatprep.subr.bf16.mxu0 0
  %1336 = vmatpush1.bf16.msra.mxu0 %v1114
  %1337 = vmatprep.subr.bf16.mxu0 0
  %1338 = vmatpush1.bf16.msra.mxu0 %v1111
  %1339 = vmatprep.subr.bf16.mxu0 0
  %1340 = vmatpush1.bf16.msra.mxu0 %v1108
  %1341 = vmatprep.subr.bf16.mxu0 0
  %1342 = vmatpush1.bf16.msra.mxu0 %v1105
  %1343 = vmatprep.subr.bf16.mxu0 0
  %1344 = vmatpush1.bf16.msra.mxu0 %v1102
  %1345 = vmatprep.subr.bf16.mxu0 0
  %1346 = vmatpush1.bf16.msra.mxu0 %v1099
  %1347 = vmatprep.subr.bf16.mxu0 0
  %1348 = vmatpush2.bf16.msra.mxu0 0
  %1349 = vmatprep.subr.bf16.mxu0 0
  %1350 = vmatpush2.bf16.msra.mxu0 0
  %1351 = vmatprep.subr.bf16.mxu0 0
  %1352 = vmatpush2.bf16.msra.mxu0 0
  %1353 = vmatprep.subr.bf16.mxu0 0
  %1354 = vmatpush2.bf16.msra.mxu0 0
  %1355 = vmatprep.subr.bf16.mxu0 0
  %1356 = vmatpush2.bf16.msra.mxu0 0
  %1357 = vmatprep.subr.bf16.mxu0 0
  %1358 = vmatpush2.bf16.msra.mxu0 0
  %1359 = vmatprep.subr.bf16.mxu0 0
  %1360 = vmatpush2.bf16.msra.mxu0 0
  %1361 = vmatprep.subr.bf16.mxu0 0
  %1362 = vmatpush2.bf16.msra.mxu0 0
  %1363 = vmatprep.mubr.bf16.mxu0 0
  %1364 = vmatmul.mubr.bf16.gmra.mxu0 %v711
  %v1365 = vpop.f32.mrf.mxu0
  %v1366 = vadd.f32 %v1326, %v1365
  %v1367 = vpop.f32.mrf.mxu0
  %v1368 = vpop.f32.mrf.mxu0
  %v1369 = vpop.f32.mrf.mxu0
  %1370 = vdwg.mxu0
  %v1371 = vmax.f32 %v1285, 0.0
  %v1372 = vmax.f32 %v1287, 0.0
  %v1373 = vmax.f32 %v1366, 0.0
  %v1374 = vpack.c.bf16 %v1371, %v1371
  %v1375 = vpack.c.bf16 %v1372, %v1372
  %v1376 = vpack.c.bf16 %v1373, %v1373
  %v1377 = vld [vmem:[%s5] sm:$0xff]
  %v1378 = vld [vmem:[%s5 + $0x8] sm:$0xf]
  %v1379 = vld [vmem:[%s5 + $0xc] sm:$0xff]
  %v1380 = vld [vmem:[%s5 + $0x14] sm:$0xf]
  %v1381 = vld [vmem:[%s5 + $0x18] sm:$0xff]
  %v1382 = vld [vmem:[%s5 + $0x20] sm:$0xf]
  %v1383 = vld [vmem:[%s5 + $0x24] sm:$0xff]
  %v1384 = vld [vmem:[%s5 + $0x2c] sm:$0xf]
  %v1385 = vld [vmem:[%s5 + $0x30] sm:$0xff]
  %v1386 = vld [vmem:[%s5 + $0x38] sm:$0xf]
  %v1387 = vld [vmem:[%s5 + $0x3c] sm:$0xff]
  %v1388 = vld [vmem:[%s5 + $0x44] sm:$0xf]
  %v1389 = vld [vmem:[%s5 + $0x48] sm:$0xff]
  %v1390 = vld [vmem:[%s5 + $0x50] sm:$0xf]
  %v1391 = vld [vmem:[%s5 + $0x54] sm:$0xff]
  %v1392 = vld [vmem:[%s5 + $0x5c] sm:$0xf]
  %v1393 = vld [vmem:[%s5 + $0x60] sm:$0xff]
  %v1394 = vld [vmem:[%s5 + $0x68] sm:$0xf]
  %v1395 = vld [vmem:[%s5 + $0x6c] sm:$0xff]
  %v1396 = vld [vmem:[%s5 + $0x74] sm:$0xf]
  %v1397 = vld [vmem:[%s5 + $0x78] sm:$0xff]
  %v1398 = vld [vmem:[%s5 + $0x80] sm:$0xf]
  %v1399 = vld [vmem:[%s5 + $0x84] sm:$0xff]
  %v1400 = vld [vmem:[%s5 + $0x8c] sm:$0xf]
  %v1401 = vld [vmem:[%s5 + $0x90] sm:$0xff]
  %v1402 = vld [vmem:[%s5 + $0x98] sm:$0xf]
  %v1403 = vld [vmem:[%s5 + $0x9c] sm:$0xff]
  %v1404 = vld [vmem:[%s5 + $0xa4] sm:$0xf]
  %v1405 = vld [vmem:[%s5 + $0xa8] sm:$0xff]
  %v1406 = vld [vmem:[%s5 + $0xb0] sm:$0xf]
  %v1407 = vld [vmem:[%s5 + $0xb4] sm:$0xff]
  %v1408 = vld [vmem:[%s5 + $0xbc] sm:$0xf]
  %v1409 = vld [vmem:[%s5 + $0xc0] sm:$0xff]
  %v1410 = vld [vmem:[%s5 + $0xc8] sm:$0xf]
  %v1411 = vld [vmem:[%s5 + $0xcc] sm:$0xff]
  %v1412 = vld [vmem:[%s5 + $0xd4] sm:$0xf]
  %v1413 = vld [vmem:[%s5 + $0xd8] sm:$0xff]
  %v1414 = vld [vmem:[%s5 + $0xe0] sm:$0xf]
  %v1415 = vld [vmem:[%s5 + $0xe4] sm:$0xff]
  %v1416 = vld [vmem:[%s5 + $0xec] sm:$0xf]
  %v1417 = vld [vmem:[%s5 + $0xf0] sm:$0xff]
  %v1418 = vld [vmem:[%s5 + $0xf8] sm:$0xf]
  %v1419 = vld [vmem:[%s5 + $0xfc] sm:$0xff]
  %v1420 = vld [vmem:[%s5 + $0x104] sm:$0xf]
  %v1421 = vld [vmem:[%s5 + $0x108] sm:$0xff]
  %v1422 = vld [vmem:[%s5 + $0x110] sm:$0xf]
  %v1423 = vld [vmem:[%s5 + $0x114] sm:$0xff]
  %v1424 = vld [vmem:[%s5 + $0x11c] sm:$0xf]
  %v1425 = vld [vmem:[%s5 + $0x120] sm:$0xff]
  %v1426 = vld [vmem:[%s5 + $0x128] sm:$0xf]
  %v1427 = vld [vmem:[%s5 + $0x12c] sm:$0xff]
  %v1428 = vld [vmem:[%s5 + $0x134] sm:$0xf]
  %v1429 = vld [vmem:[%s5 + $0x138] sm:$0xff]
  %v1430 = vld [vmem:[%s5 + $0x140] sm:$0xf]
  %v1431 = vld [vmem:[%s5 + $0x144] sm:$0xff]
  %v1432 = vld [vmem:[%s5 + $0x14c] sm:$0xf]
  %v1433 = vld [vmem:[%s5 + $0x150] sm:$0xff]
  %v1434 = vld [vmem:[%s5 + $0x158] sm:$0xf]
  %v1435 = vld [vmem:[%s5 + $0x15c] sm:$0xff]
  %v1436 = vld [vmem:[%s5 + $0x164] sm:$0xf]
  %v1437 = vld [vmem:[%s5 + $0x168] sm:$0xff]
  %v1438 = vld [vmem:[%s5 + $0x170] sm:$0xf]
  %v1439 = vld [vmem:[%s5 + $0x174] sm:$0xff]
  %v1440 = vld [vmem:[%s5 + $0x17c] sm:$0xf]
  %v1441 = vld [vmem:[%s5 + $0x180] sm:$0xff]
  %v1442 = vld [vmem:[%s5 + $0x188] sm:$0xf]
  %v1443 = vld [vmem:[%s5 + $0x18c] sm:$0xff]
  %v1444 = vld [vmem:[%s5 + $0x194] sm:$0xf]
  %v1445 = vld [vmem:[%s5 + $0x198] sm:$0xff]
  %v1446 = vld [vmem:[%s5 + $0x1a0] sm:$0xf]
  %v1447 = vld [vmem:[%s5 + $0x1a4] sm:$0xff]
  %v1448 = vld [vmem:[%s5 + $0x1ac] sm:$0xf]
  %v1449 = vld [vmem:[%s5 + $0x1b0] sm:$0xff]
  %v1450 = vld [vmem:[%s5 + $0x1b8] sm:$0xf]
  %v1451 = vld [vmem:[%s5 + $0x1bc] sm:$0xff]
  %v1452 = vld [vmem:[%s5 + $0x1c4] sm:$0xf]
  %v1453 = vld [vmem:[%s5 + $0x1c8] sm:$0xff]
  %v1454 = vld [vmem:[%s5 + $0x1d0] sm:$0xf]
  %v1455 = vld [vmem:[%s5 + $0x1d4] sm:$0xff]
  %v1456 = vld [vmem:[%s5 + $0x1dc] sm:$0xf]
  %v1457 = vld [vmem:[%s5 + $0x1e0] sm:$0xff]
  %v1458 = vld [vmem:[%s5 + $0x1e8] sm:$0xf]
  %v1459 = vld [vmem:[%s5 + $0x1ec] sm:$0xff]
  %v1460 = vld [vmem:[%s5 + $0x1f4] sm:$0xf]
  %v1461 = vld [vmem:[%s5 + $0x1f8] sm:$0xff]
  %v1462 = vld [vmem:[%s5 + $0x200] sm:$0xf]
  %v1463 = vld [vmem:[%s5 + $0x204] sm:$0xff]
  %v1464 = vld [vmem:[%s5 + $0x20c] sm:$0xf]
  %v1465 = vld [vmem:[%s5 + $0x210] sm:$0xff]
  %v1466 = vld [vmem:[%s5 + $0x218] sm:$0xf]
  %v1467 = vld [vmem:[%s5 + $0x21c] sm:$0xff]
  %v1468 = vld [vmem:[%s5 + $0x224] sm:$0xf]
  %v1469 = vld [vmem:[%s5 + $0x228] sm:$0xff]
  %v1470 = vld [vmem:[%s5 + $0x230] sm:$0xf]
  %v1471 = vld [vmem:[%s5 + $0x234] sm:$0xff]
  %v1472 = vld [vmem:[%s5 + $0x23c] sm:$0xf]
  %v1473 = vld [vmem:[%s6] sm:$0x7]
  %v1570 = vunpack.c.l.b16 %v1377
  %v1571 = vunpack.c.h.b16 %v1377
  %v1572 = vunpack.c.l.b16 %v1378
  %v1573 = vunpack.c.l.b16 %v1379
  %v1574 = vunpack.c.h.b16 %v1379
  %v1575 = vunpack.c.l.b16 %v1380
  %v1576 = vunpack.c.l.b16 %v1381
  %v1577 = vunpack.c.h.b16 %v1381
  %v1578 = vunpack.c.l.b16 %v1382
  %v1579 = vunpack.c.l.b16 %v1383
  %v1580 = vunpack.c.h.b16 %v1383
  %v1581 = vunpack.c.l.b16 %v1384
  %v1582 = vunpack.c.l.b16 %v1385
  %v1583 = vunpack.c.h.b16 %v1385
  %v1584 = vunpack.c.l.b16 %v1386
  %v1585 = vunpack.c.l.b16 %v1387
  %v1586 = vunpack.c.h.b16 %v1387
  %v1587 = vunpack.c.l.b16 %v1388
  %v1588 = vunpack.c.l.b16 %v1389
  %v1589 = vunpack.c.h.b16 %v1389
  %v1590 = vunpack.c.l.b16 %v1390
  %v1591 = vunpack.c.l.b16 %v1391
  %v1592 = vunpack.c.h.b16 %v1391
  %v1593 = vunpack.c.l.b16 %v1392
  %v1594 = vunpack.c.l.b16 %v1393
  %v1595 = vunpack.c.h.b16 %v1393
  %v1596 = vunpack.c.l.b16 %v1394
  %v1597 = vunpack.c.l.b16 %v1395
  %v1598 = vunpack.c.h.b16 %v1395
  %v1599 = vunpack.c.l.b16 %v1396
  %v1600 = vunpack.c.l.b16 %v1397
  %v1601 = vunpack.c.h.b16 %v1397
  %v1602 = vunpack.c.l.b16 %v1398
  %v1603 = vunpack.c.l.b16 %v1399
  %v1604 = vunpack.c.h.b16 %v1399
  %v1605 = vunpack.c.l.b16 %v1400
  %v1606 = vunpack.c.l.b16 %v1401
  %v1607 = vunpack.c.h.b16 %v1401
  %v1608 = vunpack.c.l.b16 %v1402
  %v1609 = vunpack.c.l.b16 %v1403
  %v1610 = vunpack.c.h.b16 %v1403
  %v1611 = vunpack.c.l.b16 %v1404
  %v1612 = vunpack.c.l.b16 %v1405
  %v1613 = vunpack.c.h.b16 %v1405
  %v1614 = vunpack.c.l.b16 %v1406
  %v1615 = vunpack.c.l.b16 %v1407
  %v1616 = vunpack.c.h.b16 %v1407
  %v1617 = vunpack.c.l.b16 %v1408
  %v1618 = vunpack.c.l.b16 %v1409
  %v1619 = vunpack.c.h.b16 %v1409
  %v1620 = vunpack.c.l.b16 %v1410
  %v1621 = vunpack.c.l.b16 %v1411
  %v1622 = vunpack.c.h.b16 %v1411
  %v1623 = vunpack.c.l.b16 %v1412
  %v1624 = vunpack.c.l.b16 %v1413
  %v1625 = vunpack.c.h.b16 %v1413
  %v1626 = vunpack.c.l.b16 %v1414
  %v1627 = vunpack.c.l.b16 %v1415
  %v1628 = vunpack.c.h.b16 %v1415
  %v1629 = vunpack.c.l.b16 %v1416
  %v1630 = vunpack.c.l.b16 %v1417
  %v1631 = vunpack.c.h.b16 %v1417
  %v1632 = vunpack.c.l.b16 %v1418
  %v1633 = vunpack.c.l.b16 %v1419
  %v1634 = vunpack.c.h.b16 %v1419
  %v1635 = vunpack.c.l.b16 %v1420
  %v1636 = vunpack.c.l.b16 %v1421
  %v1637 = vunpack.c.h.b16 %v1421
  %v1638 = vunpack.c.l.b16 %v1422
  %v1639 = vunpack.c.l.b16 %v1423
  %v1640 = vunpack.c.h.b16 %v1423
  %v1641 = vunpack.c.l.b16 %v1424
  %v1642 = vunpack.c.l.b16 %v1425
  %v1643 = vunpack.c.h.b16 %v1425
  %v1644 = vunpack.c.l.b16 %v1426
  %v1645 = vunpack.c.l.b16 %v1427
  %v1646 = vunpack.c.h.b16 %v1427
  %v1647 = vunpack.c.l.b16 %v1428
  %v1648 = vunpack.c.l.b16 %v1429
  %v1649 = vunpack.c.h.b16 %v1429
  %v1650 = vunpack.c.l.b16 %v1430
  %v1651 = vunpack.c.l.b16 %v1431
  %v1652 = vunpack.c.h.b16 %v1431
  %v1653 = vunpack.c.l.b16 %v1432
  %v1654 = vunpack.c.l.b16 %v1433
  %v1655 = vunpack.c.h.b16 %v1433
  %v1656 = vunpack.c.l.b16 %v1434
  %v1657 = vunpack.c.l.b16 %v1435
  %v1658 = vunpack.c.h.b16 %v1435
  %v1659 = vunpack.c.l.b16 %v1436
  %v1660 = vunpack.c.l.b16 %v1437
  %v1661 = vunpack.c.h.b16 %v1437
  %v1662 = vunpack.c.l.b16 %v1438
  %v1663 = vunpack.c.l.b16 %v1439
  %v1664 = vunpack.c.h.b16 %v1439
  %v1665 = vunpack.c.l.b16 %v1440
  %v1666 = vunpack.c.l.b16 %v1441
  %v1667 = vunpack.c.h.b16 %v1441
  %v1668 = vunpack.c.l.b16 %v1442
  %v1669 = vunpack.c.l.b16 %v1443
  %v1670 = vunpack.c.h.b16 %v1443
  %v1671 = vunpack.c.l.b16 %v1444
  %v1672 = vunpack.c.l.b16 %v1445
  %v1673 = vunpack.c.h.b16 %v1445
  %v1674 = vunpack.c.l.b16 %v1446
  %v1675 = vunpack.c.l.b16 %v1447
  %v1676 = vunpack.c.h.b16 %v1447
  %v1677 = vunpack.c.l.b16 %v1448
  %v1678 = vunpack.c.l.b16 %v1449
  %v1679 = vunpack.c.h.b16 %v1449
  %v1680 = vunpack.c.l.b16 %v1450
  %v1681 = vunpack.c.l.b16 %v1451
  %v1682 = vunpack.c.h.b16 %v1451
  %v1683 = vunpack.c.l.b16 %v1452
  %v1684 = vunpack.c.l.b16 %v1453
  %v1685 = vunpack.c.h.b16 %v1453
  %v1686 = vunpack.c.l.b16 %v1454
  %v1687 = vunpack.c.l.b16 %v1455
  %v1688 = vunpack.c.h.b16 %v1455
  %v1689 = vunpack.c.l.b16 %v1456
  %v1690 = vunpack.c.l.b16 %v1457
  %v1691 = vunpack.c.h.b16 %v1457
  %v1692 = vunpack.c.l.b16 %v1458
  %v1693 = vunpack.c.l.b16 %v1459
  %v1694 = vunpack.c.h.b16 %v1459
  %v1695 = vunpack.c.l.b16 %v1460
  %v1696 = vunpack.c.l.b16 %v1461
  %v1697 = vunpack.c.h.b16 %v1461
  %v1698 = vunpack.c.l.b16 %v1462
  %v1699 = vunpack.c.l.b16 %v1463
  %v1700 = vunpack.c.h.b16 %v1463
  %v1701 = vunpack.c.l.b16 %v1464
  %v1702 = vunpack.c.l.b16 %v1465
  %v1703 = vunpack.c.h.b16 %v1465
  %v1704 = vunpack.c.l.b16 %v1466
  %v1705 = vunpack.c.l.b16 %v1467
  %v1706 = vunpack.c.h.b16 %v1467
  %v1707 = vunpack.c.l.b16 %v1468
  %v1708 = vunpack.c.l.b16 %v1469
  %v1709 = vunpack.c.h.b16 %v1469
  %v1710 = vunpack.c.l.b16 %v1470
  %v1711 = vunpack.c.l.b16 %v1471
  %v1712 = vunpack.c.h.b16 %v1471
  %v1713 = vunpack.c.l.b16 %v1472
  %v1714 = vpack.c.b16 %v1573, %v1570
  %v1715 = vpack.c.b16 %v1574, %v1571
  %v1716 = vpack.c.b16 %v1575, %v1572
  %v1717 = vpack.c.b16 %v1579, %v1576
  %v1718 = vpack.c.b16 %v1580, %v1577
  %v1719 = vpack.c.b16 %v1581, %v1578
  %v1720 = vpack.c.b16 %v1585, %v1582
  %v1721 = vpack.c.b16 %v1586, %v1583
  %v1722 = vpack.c.b16 %v1587, %v1584
  %v1723 = vpack.c.b16 %v1591, %v1588
  %v1724 = vpack.c.b16 %v1592, %v1589
  %v1725 = vpack.c.b16 %v1593, %v1590
  %v1726 = vpack.c.b16 %v1597, %v1594
  %v1727 = vpack.c.b16 %v1598, %v1595
  %v1728 = vpack.c.b16 %v1599, %v1596
  %v1729 = vpack.c.b16 %v1603, %v1600
  %v1730 = vpack.c.b16 %v1604, %v1601
  %v1731 = vpack.c.b16 %v1605, %v1602
  %v1732 = vpack.c.b16 %v1609, %v1606
  %v1733 = vpack.c.b16 %v1610, %v1607
  %v1734 = vpack.c.b16 %v1611, %v1608
  %v1735 = vpack.c.b16 %v1615, %v1612
  %v1736 = vpack.c.b16 %v1616, %v1613
  %v1737 = vpack.c.b16 %v1617, %v1614
  %v1738 = vpack.c.b16 %v1621, %v1618
  %v1739 = vpack.c.b16 %v1622, %v1619
  %v1740 = vpack.c.b16 %v1623, %v1620
  %v1741 = vpack.c.b16 %v1627, %v1624
  %v1742 = vpack.c.b16 %v1628, %v1625
  %v1743 = vpack.c.b16 %v1629, %v1626
  %v1744 = vpack.c.b16 %v1633, %v1630
  %v1745 = vpack.c.b16 %v1634, %v1631
  %v1746 = vpack.c.b16 %v1635, %v1632
  %v1747 = vpack.c.b16 %v1639, %v1636
  %v1748 = vpack.c.b16 %v1640, %v1637
  %v1749 = vpack.c.b16 %v1641, %v1638
  %v1750 = vpack.c.b16 %v1645, %v1642
  %v1751 = vpack.c.b16 %v1646, %v1643
  %v1752 = vpack.c.b16 %v1647, %v1644
  %v1753 = vpack.c.b16 %v1651, %v1648
  %v1754 = vpack.c.b16 %v1652, %v1649
  %v1755 = vpack.c.b16 %v1653, %v1650
  %v1756 = vpack.c.b16 %v1657, %v1654
  %v1757 = vpack.c.b16 %v1658, %v1655
  %v1758 = vpack.c.b16 %v1659, %v1656
  %v1759 = vpack.c.b16 %v1663, %v1660
  %v1760 = vpack.c.b16 %v1664, %v1661
  %v1761 = vpack.c.b16 %v1665, %v1662
  %v1762 = vpack.c.b16 %v1669, %v1666
  %v1763 = vpack.c.b16 %v1670, %v1667
  %v1764 = vpack.c.b16 %v1671, %v1668
  %v1765 = vpack.c.b16 %v1675, %v1672
  %v1766 = vpack.c.b16 %v1676, %v1673
  %v1767 = vpack.c.b16 %v1677, %v1674
  %v1768 = vpack.c.b16 %v1681, %v1678
  %v1769 = vpack.c.b16 %v1682, %v1679
  %v1770 = vpack.c.b16 %v1683, %v1680
  %v1771 = vpack.c.b16 %v1687, %v1684
  %v1772 = vpack.c.b16 %v1688, %v1685
  %v1773 = vpack.c.b16 %v1689, %v1686
  %v1774 = vpack.c.b16 %v1693, %v1690
  %v1775 = vpack.c.b16 %v1694, %v1691
  %v1776 = vpack.c.b16 %v1695, %v1692
  %v1777 = vpack.c.b16 %v1699, %v1696
  %v1778 = vpack.c.b16 %v1700, %v1697
  %v1779 = vpack.c.b16 %v1701, %v1698
  %v1780 = vpack.c.b16 %v1705, %v1702
  %v1781 = vpack.c.b16 %v1706, %v1703
  %v1782 = vpack.c.b16 %v1707, %v1704
  %v1783 = vpack.c.b16 %v1711, %v1708
  %v1784 = vpack.c.b16 %v1712, %v1709
  %v1785 = vpack.c.b16 %v1713, %v1710
  %v1859 = vlaneseq
  %v1860 = vshrl.u32 %v1859, 7
  %v1861 = vsub.s32 0, %v1860
  %v1862 = vrot.slane %v1473, %v1861
  %v1863 = vlaneseq
  %v1864 = vshrl.u32 %v1863, 7
  %v1865 = vsub.s32 1, %v1864
  %v1866 = vrot.slane %v1473, %v1865
  %v1867 = vlaneseq
  %v1868 = vshrl.u32 %v1867, 7
  %v1869 = vsub.s32 2, %v1868
  %v1870 = vrot.slane %v1473, %v1869
  %1874 = vmatprep.subr.bf16.mxu0 %v1736
  %1875 = vmatpush1.bf16.msra.mxu0 %v1735
  %1876 = vmatprep.subr.bf16.mxu0 %v1733
  %1877 = vmatpush1.bf16.msra.mxu0 %v1732
  %1878 = vmatprep.subr.bf16.mxu0 %v1730
  %1879 = vmatpush1.bf16.msra.mxu0 %v1729
  %1880 = vmatprep.subr.bf16.mxu0 %v1727
  %1881 = vmatpush1.bf16.msra.mxu0 %v1726
  %1882 = vmatprep.subr.bf16.mxu0 %v1724
  %1883 = vmatpush1.bf16.msra.mxu0 %v1723
  %1884 = vmatprep.subr.bf16.mxu0 %v1721
  %1885 = vmatpush1.bf16.msra.mxu0 %v1720
  %1886 = vmatprep.subr.bf16.mxu0 %v1718
  %1887 = vmatpush1.bf16.msra.mxu0 %v1717
  %1888 = vmatprep.subr.bf16.mxu0 %v1715
  %1889 = vmatpush1.bf16.msra.mxu0 %v1714
  %1890 = vmatprep.subr.bf16.mxu0 %v1760
  %1891 = vmatpush2.bf16.msra.mxu0 %v1759
  %1892 = vmatprep.subr.bf16.mxu0 %v1757
  %1893 = vmatpush2.bf16.msra.mxu0 %v1756
  %1894 = vmatprep.subr.bf16.mxu0 %v1754
  %1895 = vmatpush2.bf16.msra.mxu0 %v1753
  %1896 = vmatprep.subr.bf16.mxu0 %v1751
  %1897 = vmatpush2.bf16.msra.mxu0 %v1750
  %1898 = vmatprep.subr.bf16.mxu0 %v1748
  %1899 = vmatpush2.bf16.msra.mxu0 %v1747
  %1900 = vmatprep.subr.bf16.mxu0 %v1745
  %1901 = vmatpush2.bf16.msra.mxu0 %v1744
  %1902 = vmatprep.subr.bf16.mxu0 %v1742
  %1903 = vmatpush2.bf16.msra.mxu0 %v1741
  %1904 = vmatprep.subr.bf16.mxu0 %v1739
  %1905 = vmatpush2.bf16.msra.mxu0 %v1738
  %1906 = vmatprep.mubr.bf16.mxu0 %v1375
  %1907 = vmatmul.mubr.bf16.gmra.mxu0 %v1374
  %v1908 = vpop.f32.mrf.mxu0
  %v1909 = vadd.f32 %v1862, %v1908
  %v1910 = vpop.f32.mrf.mxu0
  %v1911 = vadd.f32 %v1866, %v1910
  %v1912 = vpop.f32.mrf.mxu0
  %v1913 = vpop.f32.mrf.mxu0
  %1914 = vdwg.mxu0
  %1915 = vmatprep.subr.bf16.mxu0 %v1784
  %1916 = vmatpush1.bf16.msra.mxu0 %v1783
  %1917 = vmatprep.subr.bf16.mxu0 %v1781
  %1918 = vmatpush1.bf16.msra.mxu0 %v1780
  %1919 = vmatprep.subr.bf16.mxu0 %v1778
  %1920 = vmatpush1.bf16.msra.mxu0 %v1777
  %1921 = vmatprep.subr.bf16.mxu0 %v1775
  %1922 = vmatpush1.bf16.msra.mxu0 %v1774
  %1923 = vmatprep.subr.bf16.mxu0 %v1772
  %1924 = vmatpush1.bf16.msra.mxu0 %v1771
  %1925 = vmatprep.subr.bf16.mxu0 %v1769
  %1926 = vmatpush1.bf16.msra.mxu0 %v1768
  %1927 = vmatprep.subr.bf16.mxu0 %v1766
  %1928 = vmatpush1.bf16.msra.mxu0 %v1765
  %1929 = vmatprep.subr.bf16.mxu0 %v1763
  %1930 = vmatpush1.bf16.msra.mxu0 %v1762
  %1931 = vmatprep.subr.bf16.mxu0 0
  %1932 = vmatpush2.bf16.msra.mxu0 0
  %1933 = vmatprep.subr.bf16.mxu0 0
  %1934 = vmatpush2.bf16.msra.mxu0 0
  %1935 = vmatprep.subr.bf16.mxu0 0
  %1936 = vmatpush2.bf16.msra.mxu0 0
  %1937 = vmatprep.subr.bf16.mxu0 0
  %1938 = vmatpush2.bf16.msra.mxu0 0
  %1939 = vmatprep.subr.bf16.mxu0 0
  %1940 = vmatpush2.bf16.msra.mxu0 0
  %1941 = vmatprep.subr.bf16.mxu0 0
  %1942 = vmatpush2.bf16.msra.mxu0 0
  %1943 = vmatprep.subr.bf16.mxu0 0
  %1944 = vmatpush2.bf16.msra.mxu0 0
  %1945 = vmatprep.subr.bf16.mxu0 0
  %1946 = vmatpush2.bf16.msra.mxu0 0
  %1947 = vmatprep.mubr.bf16.mxu0 0
  %1948 = vmatmul.mubr.bf16.gmra.mxu0 %v1376
  %v1949 = vpop.f32.mrf.mxu0
  %v1950 = vadd.f32 %v1909, %v1949
  %v1951 = vpop.f32.mrf.mxu0
  %v1952 = vadd.f32 %v1911, %v1951
  %v1953 = vpop.f32.mrf.mxu0
  %v1954 = vpop.f32.mrf.mxu0
  %1955 = vdwg.mxu0
  %1956 = vmatprep.subr.bf16.mxu0 0
  %1957 = vmatpush1.bf16.msra.mxu0 %v1737
  %1958 = vmatprep.subr.bf16.mxu0 0
  %1959 = vmatpush1.bf16.msra.mxu0 %v1734
  %1960 = vmatprep.subr.bf16.mxu0 0
  %1961 = vmatpush1.bf16.msra.mxu0 %v1731
  %1962 = vmatprep.subr.bf16.mxu0 0
  %1963 = vmatpush1.bf16.msra.mxu0 %v1728
  %1964 = vmatprep.subr.bf16.mxu0 0
  %1965 = vmatpush1.bf16.msra.mxu0 %v1725
  %1966 = vmatprep.subr.bf16.mxu0 0
  %1967 = vmatpush1.bf16.msra.mxu0 %v1722
  %1968 = vmatprep.subr.bf16.mxu0 0
  %1969 = vmatpush1.bf16.msra.mxu0 %v1719
  %1970 = vmatprep.subr.bf16.mxu0 0
  %1971 = vmatpush1.bf16.msra.mxu0 %v1716
  %1972 = vmatprep.subr.bf16.mxu0 0
  %1973 = vmatpush2.bf16.msra.mxu0 %v1761
  %1974 = vmatprep.subr.bf16.mxu0 0
  %1975 = vmatpush2.bf16.msra.mxu0 %v1758
  %1976 = vmatprep.subr.bf16.mxu0 0
  %1977 = vmatpush2.bf16.msra.mxu0 %v1755
  %1978 = vmatprep.subr.bf16.mxu0 0
  %1979 = vmatpush2.bf16.msra.mxu0 %v1752
  %1980 = vmatprep.subr.bf16.mxu0 0
  %1981 = vmatpush2.bf16.msra.mxu0 %v1749
  %1982 = vmatprep.subr.bf16.mxu0 0
  %1983 = vmatpush2.bf16.msra.mxu0 %v1746
  %1984 = vmatprep.subr.bf16.mxu0 0
  %1985 = vmatpush2.bf16.msra.mxu0 %v1743
  %1986 = vmatprep.subr.bf16.mxu0 0
  %1987 = vmatpush2.bf16.msra.mxu0 %v1740
  %1988 = vmatprep.mubr.bf16.mxu0 %v1375
  %1989 = vmatmul.mubr.bf16.gmra.mxu0 %v1374
  %v1990 = vpop.f32.mrf.mxu0
  %v1991 = vadd.f32 %v1870, %v1990
  %v1992 = vpop.f32.mrf.mxu0
  %v1993 = vpop.f32.mrf.mxu0
  %v1994 = vpop.f32.mrf.mxu0
  %1995 = vdwg.mxu0
  %1996 = vmatprep.subr.bf16.mxu0 0
  %1997 = vmatpush1.bf16.msra.mxu0 %v1785
  %1998 = vmatprep.subr.bf16.mxu0 0
  %1999 = vmatpush1.bf16.msra.mxu0 %v1782
  %2000 = vmatprep.subr.bf16.mxu0 0
  %2001 = vmatpush1.bf16.msra.mxu0 %v1779
  %2002 = vmatprep.subr.bf16.mxu0 0
  %2003 = vmatpush1.bf16.msra.mxu0 %v1776
  %2004 = vmatprep.subr.bf16.mxu0 0
  %2005 = vmatpush1.bf16.msra.mxu0 %v1773
  %2006 = vmatprep.subr.bf16.mxu0 0
  %2007 = vmatpush1.bf16.msra.mxu0 %v1770
  %2008 = vmatprep.subr.bf16.mxu0 0
  %2009 = vmatpush1.bf16.msra.mxu0 %v1767
  %2010 = vmatprep.subr.bf16.mxu0 0
  %2011 = vmatpush1.bf16.msra.mxu0 %v1764
  %2012 = vmatprep.subr.bf16.mxu0 0
  %2013 = vmatpush2.bf16.msra.mxu0 0
  %2014 = vmatprep.subr.bf16.mxu0 0
  %2015 = vmatpush2.bf16.msra.mxu0 0
  %2016 = vmatprep.subr.bf16.mxu0 0
  %2017 = vmatpush2.bf16.msra.mxu0 0
  %2018 = vmatprep.subr.bf16.mxu0 0
  %2019 = vmatpush2.bf16.msra.mxu0 0
  %2020 = vmatprep.subr.bf16.mxu0 0
  %2021 = vmatpush2.bf16.msra.mxu0 0
  %2022 = vmatprep.subr.bf16.mxu0 0
  %2023 = vmatpush2.bf16.msra.mxu0 0
  %2024 = vmatprep.subr.bf16.mxu0 0
  %2025 = vmatpush2.bf16.msra.mxu0 0
  %2026 = vmatprep.subr.bf16.mxu0 0
  %2027 = vmatpush2.bf16.msra.mxu0 0
  %2028 = vmatprep.mubr.bf16.mxu0 0
  %2029 = vmatmul.mubr.bf16.gmra.mxu0 %v1376
  %v2030 = vpop.f32.mrf.mxu0
  %v2031 = vadd.f32 %v1991, %v2030
  %v2032 = vpop.f32.mrf.mxu0
  %v2033 = vpop.f32.mrf.mxu0
  %v2034 = vpop.f32.mrf.mxu0
  %2035 = vdwg.mxu0
  %v2039 = vcombine.low %v1950, %v1952
  %v2041 = vunpack.c.l.s4 1966171168
  %v2042 = vunpack.c.0.s8 %v2041
  %v2043 = vlaneseq
  %v2044 = vshrl.u32 %v2043, 7
  %v2045 = vsub.s32 %v2042, %v2044
  %v2046 = vrot.slane %v2039, %v2045
  %v2048 = vunpack.c.l.s4 1966171168
  %v2049 = vunpack.c.0.s8 %v2048
  %v2050 = vlaneseq
  %v2051 = vshrl.u32 %v2050, 7
  %v2052 = vsub.s32 %v2049, %v2051
  %v2053 = vrot.slane %v2031, %v2052
  %v2054 = vcombine.low %v2046, %v2053
  %v2056 = vunpack.c.l.s4 1966171168
  %v2057 = vunpack.c.0.s8 %v2056
  %v2058 = vlaneseq
  %v2059 = vshrl.u32 %v2058, 7
  %v2060 = vsub.s32 %v2057, %v2059
  %v2061 = vrot.slane %v2054, %v2060
  %v2063 = vlaneseq
  %vm2064 = vcmp.ge.s32.totalorder %v2063, 0
  %vm2065 = vcmp.lt.s32.totalorder %v2063, 384
  %vm2066 = vmand %vm2064, %vm2065
  %2067 = vst.msk [vmem:[%s7] sm:$0x7] %vm2066, %v2061
  // Predicated region
  $region30: #{ffn_forward.1} parent=0 // pred_check
    _
  $region31: #{ffn_forward.1} parent=0 // pred_check_branch
    %2069 = sbr.rel (0) target = $region33
  $region32: #{ffn_forward.1} parent=0 // pred_region
    _
  $region33: #{ffn_forward.1} parent=0 // pred_fallthru
    _
  // Predicated region
  $region34: #{ffn_forward.1} parent=0 // pred_check
    _
  $region35: #{ffn_forward.1} parent=0 // pred_check_branch
    %2071 = sbr.rel (0) target = $region37
  $region36: #{ffn_forward.1} parent=0 // pred_region
    _
  $region37: #{ffn_forward.1} parent=0 // pred_fallthru
    _

</llo_original>
